<compile_context>
chip_gen: v7x
topology: tpu7x:2x2x1
jax: 0.10.0
libtpu: 0.0.40
codegen_flags: <defaults>
</compile_context>

<pallas_src>
import jax
import jax.numpy as jnp
from jax import lax
from jax.experimental import pallas as pl
from jax.experimental.pallas import tpu as pltpu


def _round_up(x, m):
    return ((x + m - 1) // m) * m


def _cdiv(a, b):
    return (a + b - 1) // b


# ----------------------------------------------------------------------------- kernel
def _make_kernel(d1: int, d2: int):
    """d1 / d2 are the true (unpadded) flattened feature dims."""
    inv_dd = 1.0 / float(d1 * d2)

    def kernel(x1_ref, x2_ref, loss_ref, gram_acc):
        step = pl.program_id(0)
        nsteps = pl.num_programs(0)

        @pl.when(step == 0)
        def _init():
            gram_acc[...] = jnp.zeros_like(gram_acc)
            loss_ref[...] = jnp.zeros_like(loss_ref)

        x1 = x1_ref[...].astype(jnp.float32)          # (tb, d1)
        x2 = x2_ref[...].astype(jnp.float32)          # (tb, d2)

        # Row-wise L2 normalization, exactly as torch: x / (||x||_2 + 1e-6).
        # Exact division (no approx reciprocal) for parity with the reference.
        n1 = jnp.sqrt(jnp.sum(x1 * x1, axis=1, keepdims=True))
        n2 = jnp.sqrt(jnp.sum(x2 * x2, axis=1, keepdims=True))
        x1n = x1 / (n1 + 1e-6)
        x2n = x2 / (n2 + 1e-6)
        # zero-padded batch rows normalize to exact zero rows -> no Gram term.

        # Cross-Gram over the batch, accumulated across batch tiles:
        #   G += x1n[tile].T @ x2n[tile]   (contraction over the tile rows)
        gram_acc[...] += lax.dot_general(
            x1n, x2n, (((0,), (0,)), ((), ())),
            preferred_element_type=jnp.float32)

        @pl.when(step == nsteps - 1)
        def _finalize():
            g = gram_acc[...]
            ss = jnp.sum(jnp.sum(g * g, axis=1, keepdims=True),
                         axis=0, keepdims=True)        # (1, 1)
            loss_ref[...] = ss * inv_dd                # mean of the squares

    return kernel


# ----------------------------------------------------------------------------- wrapper
@jax.jit
def diff_loss(input1, input2):
    """DiffLoss.forward(input1, input2) -> scalar, matching the PyTorch module."""
    B = input1.shape[0]
    x1 = input1.reshape(B, -1)
    x2 = input2.reshape(B, -1)
    d1 = x1.shape[1]
    d2 = x2.shape[1]

    # Batch tiling (perf review): balanced tiles <= 512 rows, >= 2 tiles once
    # the batch is large enough for the DMA/compute pipeline to matter.  For a
    # small batch use one full-extent block -> no padding pass at all.
    if B <= 256:
        tb, n_tiles, b_pad = B, 1, B
    else:
        n_tiles = max(2, _cdiv(B, 512))
        tb = _round_up(_cdiv(B, n_tiles), 8)
        n_tiles = _cdiv(B, tb)
        b_pad = tb * n_tiles

    # Only pad the batch when a multi-tile grid needs it (zero rows are exact
    # no-ops for the Gram).  No dtype re-materialization in the wrapper.
    if b_pad != B:
        x1 = jnp.pad(x1, ((0, b_pad - B), (0, 0)))
        x2 = jnp.pad(x2, ((0, b_pad - B), (0, 0)))

    # VMEM budget: double-buffered input tiles + the f32 Gram accumulator.
    vmem_est = (2 * tb * (d1 * x1.dtype.itemsize + d2 * x2.dtype.itemsize)
                + 4 * d1 * d2 + (1 << 20))
    vmem_limit = int(min(max(vmem_est, 16 << 20), 64 << 20))  # v7x-safe cap

    loss = pl.pallas_call(
        _make_kernel(d1, d2),
        grid=(n_tiles,),
        in_specs=[
            pl.BlockSpec((tb, d1), lambda i: (i, 0)),
            pl.BlockSpec((tb, d2), lambda i: (i, 0)),
        ],
        out_specs=pl.BlockSpec((1, 1), lambda i: (0, 0)),
        out_shape=jax.ShapeDtypeStruct((1, 1), jnp.float32),
        scratch_shapes=[pltpu.VMEM((d1, d2), jnp.float32)],   # cross-Gram acc
        compiler_params=pltpu.CompilerParams(
            dimension_semantics=("arbitrary",),
            vmem_limit_bytes=vmem_limit,
        ),
    )(x1, x2)
    return loss[0, 0]


# ----------------------------------------------------------------------------- main
if __name__ == "__main__":
    key = jax.random.PRNGKey(0)
    k1, k2 = jax.random.split(key)

    B = 2
    # DiffLoss flattens whatever it is given; use two differently shaped features.
    input1 = jax.random.normal(k1, (B, 4, 16, 16), jnp.float32)   # -> (2, 1024)
    input2 = jax.random.normal(k2, (B, 8, 8), jnp.float32)        # -> (2, 64)

    loss = diff_loss(input1, input2)
    jax.block_until_ready(loss)

    # Pure-JAX reference (same math as the PyTorch module; .detach() is a
    # gradient-only annotation and has no forward effect).
    def ref(a, b):
        a = a.reshape(a.shape[0], -1)
        b = b.reshape(b.shape[0], -1)
        an = a / (jnp.sqrt(jnp.sum(a * a, axis=1, keepdims=True)) + 1e-6)
        bn = b / (jnp.sqrt(jnp.sum(b * b, axis=1, keepdims=True)) + 1e-6)
        g = jnp.dot(an.T, bn, precision=lax.Precision.HIGHEST)
        return jnp.mean(g ** 2)

    expected = ref(input1, input2)

    assert loss.shape == ()
    assert bool(jnp.isfinite(loss))
    assert bool(jnp.allclose(loss, expected, rtol=1e-4, atol=1e-6)), (loss, expected)
    print("KERNEL_OK")
</pallas_src>

<mosaic_0001>
module attributes {stable_mosaic.version = 11 : i64} {
  func.func @kernel(%arg0: i32, %arg1: memref<2x1024xf32, #tpu.memory_space<vmem>>, %arg2: memref<2x64xf32, #tpu.memory_space<vmem>>, %arg3: memref<1x1xf32, #tpu.memory_space<vmem>>, %arg4: memref<1024x64xf32, #tpu.memory_space<vmem>>) attributes {dimension_semantics = [#tpu.dimension_semantics<arbitrary>], iteration_bounds = array<i64: 1>, scalar_prefetch = 0 : i64, scratch_operands = 1 : i64, tpu.core_type = #tpu.core_type<tc>, window_params = [{transform_indices = @transform_0, window_bounds = array<i64: 2, 1024>}, {transform_indices = @transform_1, window_bounds = array<i64: 2, 64>}, {pipeline_mode = #tpu.pipeline_mode<synchronous>, transform_indices = @transform_2, window_bounds = array<i64: 1, 1>}]} {
    %c0_i32 = arith.constant 0 : i32
    %0 = arith.cmpi eq, %arg0, %c0_i32 : i32
    %1 = arith.extui %0 : i1 to i32
    %c0_i32_0 = arith.constant 0 : i32
    %2 = arith.cmpi ne, %1, %c0_i32_0 : i32
    scf.if %2 {
      %cst_14 = arith.constant 0.000000e+00 : f32
      %28 = vector.broadcast %cst_14 : f32 to vector<1024x64xf32>
      %c0_15 = arith.constant 0 : index
      %c0_16 = arith.constant 0 : index
      %29 = vector.load %arg4[%c0_15, %c0_16] : memref<1024x64xf32, #tpu.memory_space<vmem>>, vector<1024x64xf32>
      tpu.vector_store %arg4[%c0_15, %c0_16], %28 {strides = array<i32>} : memref<1024x64xf32, #tpu.memory_space<vmem>>, vector<1024x64xf32>,
      %cst_17 = arith.constant 0.000000e+00 : f32
      %30 = vector.broadcast %cst_17 : f32 to vector<1x1xf32>
      %c0_18 = arith.constant 0 : index
      %c0_19 = arith.constant 0 : index
      %31 = vector.load %arg3[%c0_18, %c0_19] : memref<1x1xf32, #tpu.memory_space<vmem>>, vector<1x1xf32>
      tpu.vector_store %arg3[%c0_18, %c0_19], %30 {strides = array<i32>} : memref<1x1xf32, #tpu.memory_space<vmem>>, vector<1x1xf32>,
    } else {
    }
    %c0 = arith.constant 0 : index
    %c0_1 = arith.constant 0 : index
    %3 = vector.load %arg1[%c0, %c0_1] : memref<2x1024xf32, #tpu.memory_space<vmem>>, vector<2x1024xf32>
    %c0_2 = arith.constant 0 : index
    %c0_3 = arith.constant 0 : index
    %4 = vector.load %arg2[%c0_2, %c0_3] : memref<2x64xf32, #tpu.memory_space<vmem>>, vector<2x64xf32>
    %5 = arith.mulf %3, %3 : vector<2x1024xf32>
    %cst = arith.constant dense<0.000000e+00> : vector<2xf32>
    %6 = vector.multi_reduction <add>, %5, %cst [1] : vector<2x1024xf32> to vector<2xf32>
    %7 = vector.shape_cast %6 : vector<2xf32> to vector<2x1xf32>
    %8 = math.sqrt %7 : vector<2x1xf32>
    %9 = arith.mulf %4, %4 : vector<2x64xf32>
    %cst_4 = arith.constant dense<0.000000e+00> : vector<2xf32>
    %10 = vector.multi_reduction <add>, %9, %cst_4 [1] : vector<2x64xf32> to vector<2xf32>
    %11 = vector.shape_cast %10 : vector<2xf32> to vector<2x1xf32>
    %12 = math.sqrt %11 : vector<2x1xf32>
    %cst_5 = arith.constant 9.99999997E-7 : f32
    %13 = vector.broadcast %cst_5 : f32 to vector<2x1xf32>
    %14 = arith.addf %8, %13 : vector<2x1xf32>
    %15 = vector.broadcast %14 : vector<2x1xf32> to vector<2x1024xf32>
    %16 = arith.divf %3, %15 : vector<2x1024xf32>
    %cst_6 = arith.constant 9.99999997E-7 : f32
    %17 = vector.broadcast %cst_6 : f32 to vector<2x1xf32>
    %18 = arith.addf %12, %17 : vector<2x1xf32>
    %19 = vector.broadcast %18 : vector<2x1xf32> to vector<2x64xf32>
    %20 = arith.divf %4, %19 : vector<2x64xf32>
    %c0_7 = arith.constant 0 : index
    %c0_8 = arith.constant 0 : index
    %21 = vector.load %arg4[%c0_7, %c0_8] : memref<1024x64xf32, #tpu.memory_space<vmem>>, vector<1024x64xf32>
    %cst_9 = arith.constant dense<0.000000e+00> : vector<1024x64xf32>
    %22 = tpu.matmul %16, %20, %cst_9 {dimension_numbers = #tpu.dot_dimension_numbers<[0], [0], [1], [1], [0, 1, 1, 1], [], []>} : vector<2x1024xf32>, vector<2x64xf32>, vector<1024x64xf32> -> vector<1024x64xf32>
    %23 = arith.addf %21, %22 : vector<1024x64xf32>
    %c0_10 = arith.constant 0 : index
    %c0_11 = arith.constant 0 : index
    %24 = vector.load %arg4[%c0_10, %c0_11] : memref<1024x64xf32, #tpu.memory_space<vmem>>, vector<1024x64xf32>
    tpu.vector_store %arg4[%c0_10, %c0_11], %23 {strides = array<i32>} : memref<1024x64xf32, #tpu.memory_space<vmem>>, vector<1024x64xf32>,
    %c0_i32_12 = arith.constant 0 : i32
    %25 = arith.cmpi eq, %arg0, %c0_i32_12 : i32
    %26 = arith.extui %25 : i1 to i32
    %c0_i32_13 = arith.constant 0 : i32
    %27 = arith.cmpi ne, %26, %c0_i32_13 : i32
    scf.if %27 {
      %c0_14 = arith.constant 0 : index
      %c0_15 = arith.constant 0 : index
      %28 = vector.load %arg4[%c0_14, %c0_15] : memref<1024x64xf32, #tpu.memory_space<vmem>>, vector<1024x64xf32>
      %29 = arith.mulf %28, %28 : vector<1024x64xf32>
      %cst_16 = arith.constant dense<0.000000e+00> : vector<1024xf32>
      %30 = vector.multi_reduction <add>, %29, %cst_16 [1] : vector<1024x64xf32> to vector<1024xf32>
      %31 = vector.shape_cast %30 : vector<1024xf32> to vector<1024x1xf32>
      %cst_17 = arith.constant dense<0.000000e+00> : vector<1xf32>
      %32 = vector.multi_reduction <add>, %31, %cst_17 [0] : vector<1024x1xf32> to vector<1xf32>
      %33 = vector.shape_cast %32 : vector<1xf32> to vector<1x1xf32>
      %cst_18 = arith.constant 1.52587891E-5 : f32
      %34 = vector.broadcast %cst_18 : f32 to vector<1x1xf32>
      %35 = arith.mulf %33, %34 : vector<1x1xf32>
      %c0_19 = arith.constant 0 : index
      %c0_20 = arith.constant 0 : index
      %36 = vector.load %arg3[%c0_19, %c0_20] : memref<1x1xf32, #tpu.memory_space<vmem>>, vector<1x1xf32>
      tpu.vector_store %arg3[%c0_19, %c0_20], %35 {strides = array<i32>} : memref<1x1xf32, #tpu.memory_space<vmem>>, vector<1x1xf32>,
    } else {
    }
    return
  }
  func.func @transform_0(%arg0: i32) -> (i32, i32) {
    %c0_i32 = arith.constant 0 : i32
    %c0_i32_0 = arith.constant 0 : i32
    return %arg0, %c0_i32 : i32, i32
  }
  func.func @transform_1(%arg0: i32) -> (i32, i32) {
    %c0_i32 = arith.constant 0 : i32
    %c0_i32_0 = arith.constant 0 : i32
    return %arg0, %c0_i32 : i32, i32
  }
  func.func @transform_2(%arg0: i32) -> (i32, i32) {
    %c0_i32 = arith.constant 0 : i32
    %c0_i32_0 = arith.constant 0 : i32
    %c0_i32_1 = arith.constant 0 : i32
    return %c0_i32, %c0_i32_0 : i32, i32
  }
}

</mosaic_0001>

<llo_original>
// kernel: diff_loss.1
$region0: #{diff_loss.1}
  #allocation0 [shape = 'u32[]', space=smem, size = 0x4, offset = 0x4, fixed_abs, tag = 'smem constant byte address 0x4 - core index']
  #allocation1 [shape = 'u32[144,128]{1,0:T(1,128)}', space=vmem, size = 0x12000, scoped, tag = 'internal scratch']
  #allocation2 [shape = 'f32[1024,64]{1,0:T(8,128)}', space=vmem, size = 0x80000, scoped, tag = 'scratch operand']
  %s0 = inlined_call_operand.vmem [shape: f32[2,1024], index: 0, kind: input, shape index: {}]
  %s1 = inlined_call_operand.vmem [shape: f32[2,64], index: 1, kind: input, shape index: {}]
  %s2 = inlined_call_operand.hbm [shape: f32[1,1], index: 2, kind: output, shape index: {}]
  %s3 = sld [smem:[#allocation0]]
  $region26: #{diff_loss.1} parent=0
    _
  %s5 = ssub.s32 1, %s3
  %s6 = scalar_select 0, %s5, %s3
  $region1: #{diff_loss.1} parent=0
    #allocation3 [shape = 'u8[512]{0}', space=vmem, size = 0x400, scoped, tag = 'output window, operand 0, single buffered']
    #allocation4 [shape = 's32[1]{0}', space=sflag, size = 0x4, scoped, tag = 'scoped memory for diff_loss.1']
    %7 = vsyncpa [#allocation4], 0
    // Predicated region
    $region2: #{diff_loss.1} parent=1 // pred_check
      _
    $region3: #{diff_loss.1} parent=1 // pred_check_branch
      %9 = sbr.rel (0) target = $region5
    $region4: #{diff_loss.1} parent=1 // pred_region
      _
    $region5: #{diff_loss.1} parent=1 // pred_fallthru
      _
    // Predicated region
    $region6: #{diff_loss.1} parent=1 // pred_check
      _
    $region7: #{diff_loss.1} parent=1 // pred_check_branch
      %11 = sbr.rel (0) target = $region9
    $region8: #{diff_loss.1} parent=1 // pred_region
      _
    $region9: #{diff_loss.1} parent=1 // pred_fallthru
      _
    %p12 = scmp.eq.s32.totalorder 0, 0
    // Predicated region
    $region10: #{diff_loss.1} parent=1 // pred_check
      %p13 = pneg %p12
    $region11: #{diff_loss.1} parent=1 // pred_check_branch
      %15 = sbr.rel (%p13) target = $region13
    $region12: #{diff_loss.1} parent=1 // pred_region
      %vm16 = vcmask 523264
      %17 = vst.msk [vmem:[#allocation2] sm:$0xff] %vm16, 0.0
      %18 = vst.msk [vmem:[#allocation2 + $0x8] sm:$0xff] %vm16, 0.0
      %19 = vst.msk [vmem:[#allocation2 + $0x10] sm:$0xff] %vm16, 0.0
      %20 = vst.msk [vmem:[#allocation2 + $0x18] sm:$0xff] %vm16, 0.0
      %21 = vst.msk [vmem:[#allocation2 + $0x20] sm:$0xff] %vm16, 0.0
      %22 = vst.msk [vmem:[#allocation2 + $0x28] sm:$0xff] %vm16, 0.0
      %23 = vst.msk [vmem:[#allocation2 + $0x30] sm:$0xff] %vm16, 0.0
      %24 = vst.msk [vmem:[#allocation2 + $0x38] sm:$0xff] %vm16, 0.0
      %25 = vst.msk [vmem:[#allocation2 + $0x40] sm:$0xff] %vm16, 0.0
      %26 = vst.msk [vmem:[#allocation2 + $0x48] sm:$0xff] %vm16, 0.0
      %27 = vst.msk [vmem:[#allocation2 + $0x50] sm:$0xff] %vm16, 0.0
      %28 = vst.msk [vmem:[#allocation2 + $0x58] sm:$0xff] %vm16, 0.0
      %29 = vst.msk [vmem:[#allocation2 + $0x60] sm:$0xff] %vm16, 0.0
      %30 = vst.msk [vmem:[#allocation2 + $0x68] sm:$0xff] %vm16, 0.0
      %31 = vst.msk [vmem:[#allocation2 + $0x70] sm:$0xff] %vm16, 0.0
      %32 = vst.msk [vmem:[#allocation2 + $0x78] sm:$0xff] %vm16, 0.0
      %33 = vst.msk [vmem:[#allocation2 + $0x80] sm:$0xff] %vm16, 0.0
      %34 = vst.msk [vmem:[#allocation2 + $0x88] sm:$0xff] %vm16, 0.0
      %35 = vst.msk [vmem:[#allocation2 + $0x90] sm:$0xff] %vm16, 0.0
      %36 = vst.msk [vmem:[#allocation2 + $0x98] sm:$0xff] %vm16, 0.0
      %37 = vst.msk [vmem:[#allocation2 + $0xa0] sm:$0xff] %vm16, 0.0
      %38 = vst.msk [vmem:[#allocation2 + $0xa8] sm:$0xff] %vm16, 0.0
      %39 = vst.msk [vmem:[#allocation2 + $0xb0] sm:$0xff] %vm16, 0.0
      %40 = vst.msk [vmem:[#allocation2 + $0xb8] sm:$0xff] %vm16, 0.0
      %41 = vst.msk [vmem:[#allocation2 + $0xc0] sm:$0xff] %vm16, 0.0
      %42 = vst.msk [vmem:[#allocation2 + $0xc8] sm:$0xff] %vm16, 0.0
      %43 = vst.msk [vmem:[#allocation2 + $0xd0] sm:$0xff] %vm16, 0.0
      %44 = vst.msk [vmem:[#allocation2 + $0xd8] sm:$0xff] %vm16, 0.0
      %45 = vst.msk [vmem:[#allocation2 + $0xe0] sm:$0xff] %vm16, 0.0
      %46 = vst.msk [vmem:[#allocation2 + $0xe8] sm:$0xff] %vm16, 0.0
      %47 = vst.msk [vmem:[#allocation2 + $0xf0] sm:$0xff] %vm16, 0.0
      %48 = vst.msk [vmem:[#allocation2 + $0xf8] sm:$0xff] %vm16, 0.0
      %49 = vst.msk [vmem:[#allocation2 + $0x100] sm:$0xff] %vm16, 0.0
      %50 = vst.msk [vmem:[#allocation2 + $0x108] sm:$0xff] %vm16, 0.0
      %51 = vst.msk [vmem:[#allocation2 + $0x110] sm:$0xff] %vm16, 0.0
      %52 = vst.msk [vmem:[#allocation2 + $0x118] sm:$0xff] %vm16, 0.0
      %53 = vst.msk [vmem:[#allocation2 + $0x120] sm:$0xff] %vm16, 0.0
      %54 = vst.msk [vmem:[#allocation2 + $0x128] sm:$0xff] %vm16, 0.0
      %55 = vst.msk [vmem:[#allocation2 + $0x130] sm:$0xff] %vm16, 0.0
      %56 = vst.msk [vmem:[#allocation2 + $0x138] sm:$0xff] %vm16, 0.0
      %57 = vst.msk [vmem:[#allocation2 + $0x140] sm:$0xff] %vm16, 0.0
      %58 = vst.msk [vmem:[#allocation2 + $0x148] sm:$0xff] %vm16, 0.0
      %59 = vst.msk [vmem:[#allocation2 + $0x150] sm:$0xff] %vm16, 0.0
      %60 = vst.msk [vmem:[#allocation2 + $0x158] sm:$0xff] %vm16, 0.0
      %61 = vst.msk [vmem:[#allocation2 + $0x160] sm:$0xff] %vm16, 0.0
      %62 = vst.msk [vmem:[#allocation2 + $0x168] sm:$0xff] %vm16, 0.0
      %63 = vst.msk [vmem:[#allocation2 + $0x170] sm:$0xff] %vm16, 0.0
      %64 = vst.msk [vmem:[#allocation2 + $0x178] sm:$0xff] %vm16, 0.0
      %65 = vst.msk [vmem:[#allocation2 + $0x180] sm:$0xff] %vm16, 0.0
      %66 = vst.msk [vmem:[#allocation2 + $0x188] sm:$0xff] %vm16, 0.0
      %67 = vst.msk [vmem:[#allocation2 + $0x190] sm:$0xff] %vm16, 0.0
      %68 = vst.msk [vmem:[#allocation2 + $0x198] sm:$0xff] %vm16, 0.0
      %69 = vst.msk [vmem:[#allocation2 + $0x1a0] sm:$0xff] %vm16, 0.0
      %70 = vst.msk [vmem:[#allocation2 + $0x1a8] sm:$0xff] %vm16, 0.0
      %71 = vst.msk [vmem:[#allocation2 + $0x1b0] sm:$0xff] %vm16, 0.0
      %72 = vst.msk [vmem:[#allocation2 + $0x1b8] sm:$0xff] %vm16, 0.0
      %73 = vst.msk [vmem:[#allocation2 + $0x1c0] sm:$0xff] %vm16, 0.0
      %74 = vst.msk [vmem:[#allocation2 + $0x1c8] sm:$0xff] %vm16, 0.0
      %75 = vst.msk [vmem:[#allocation2 + $0x1d0] sm:$0xff] %vm16, 0.0
      %76 = vst.msk [vmem:[#allocation2 + $0x1d8] sm:$0xff] %vm16, 0.0
      %77 = vst.msk [vmem:[#allocation2 + $0x1e0] sm:$0xff] %vm16, 0.0
      %78 = vst.msk [vmem:[#allocation2 + $0x1e8] sm:$0xff] %vm16, 0.0
      %79 = vst.msk [vmem:[#allocation2 + $0x1f0] sm:$0xff] %vm16, 0.0
      %80 = vst.msk [vmem:[#allocation2 + $0x1f8] sm:$0xff] %vm16, 0.0
      %81 = vst.msk [vmem:[#allocation2 + $0x200] sm:$0xff] %vm16, 0.0
      %82 = vst.msk [vmem:[#allocation2 + $0x208] sm:$0xff] %vm16, 0.0
      %83 = vst.msk [vmem:[#allocation2 + $0x210] sm:$0xff] %vm16, 0.0
      %84 = vst.msk [vmem:[#allocation2 + $0x218] sm:$0xff] %vm16, 0.0
      %85 = vst.msk [vmem:[#allocation2 + $0x220] sm:$0xff] %vm16, 0.0
      %86 = vst.msk [vmem:[#allocation2 + $0x228] sm:$0xff] %vm16, 0.0
      %87 = vst.msk [vmem:[#allocation2 + $0x230] sm:$0xff] %vm16, 0.0
      %88 = vst.msk [vmem:[#allocation2 + $0x238] sm:$0xff] %vm16, 0.0
      %89 = vst.msk [vmem:[#allocation2 + $0x240] sm:$0xff] %vm16, 0.0
      %90 = vst.msk [vmem:[#allocation2 + $0x248] sm:$0xff] %vm16, 0.0
      %91 = vst.msk [vmem:[#allocation2 + $0x250] sm:$0xff] %vm16, 0.0
      %92 = vst.msk [vmem:[#allocation2 + $0x258] sm:$0xff] %vm16, 0.0
      %93 = vst.msk [vmem:[#allocation2 + $0x260] sm:$0xff] %vm16, 0.0
      %94 = vst.msk [vmem:[#allocation2 + $0x268] sm:$0xff] %vm16, 0.0
      %95 = vst.msk [vmem:[#allocation2 + $0x270] sm:$0xff] %vm16, 0.0
      %96 = vst.msk [vmem:[#allocation2 + $0x278] sm:$0xff] %vm16, 0.0
      %97 = vst.msk [vmem:[#allocation2 + $0x280] sm:$0xff] %vm16, 0.0
      %98 = vst.msk [vmem:[#allocation2 + $0x288] sm:$0xff] %vm16, 0.0
      %99 = vst.msk [vmem:[#allocation2 + $0x290] sm:$0xff] %vm16, 0.0
      %100 = vst.msk [vmem:[#allocation2 + $0x298] sm:$0xff] %vm16, 0.0
      %101 = vst.msk [vmem:[#allocation2 + $0x2a0] sm:$0xff] %vm16, 0.0
      %102 = vst.msk [vmem:[#allocation2 + $0x2a8] sm:$0xff] %vm16, 0.0
      %103 = vst.msk [vmem:[#allocation2 + $0x2b0] sm:$0xff] %vm16, 0.0
      %104 = vst.msk [vmem:[#allocation2 + $0x2b8] sm:$0xff] %vm16, 0.0
      %105 = vst.msk [vmem:[#allocation2 + $0x2c0] sm:$0xff] %vm16, 0.0
      %106 = vst.msk [vmem:[#allocation2 + $0x2c8] sm:$0xff] %vm16, 0.0
      %107 = vst.msk [vmem:[#allocation2 + $0x2d0] sm:$0xff] %vm16, 0.0
      %108 = vst.msk [vmem:[#allocation2 + $0x2d8] sm:$0xff] %vm16, 0.0
      %109 = vst.msk [vmem:[#allocation2 + $0x2e0] sm:$0xff] %vm16, 0.0
      %110 = vst.msk [vmem:[#allocation2 + $0x2e8] sm:$0xff] %vm16, 0.0
      %111 = vst.msk [vmem:[#allocation2 + $0x2f0] sm:$0xff] %vm16, 0.0
      %112 = vst.msk [vmem:[#allocation2 + $0x2f8] sm:$0xff] %vm16, 0.0
      %113 = vst.msk [vmem:[#allocation2 + $0x300] sm:$0xff] %vm16, 0.0
      %114 = vst.msk [vmem:[#allocation2 + $0x308] sm:$0xff] %vm16, 0.0
      %115 = vst.msk [vmem:[#allocation2 + $0x310] sm:$0xff] %vm16, 0.0
      %116 = vst.msk [vmem:[#allocation2 + $0x318] sm:$0xff] %vm16, 0.0
      %117 = vst.msk [vmem:[#allocation2 + $0x320] sm:$0xff] %vm16, 0.0
      %118 = vst.msk [vmem:[#allocation2 + $0x328] sm:$0xff] %vm16, 0.0
      %119 = vst.msk [vmem:[#allocation2 + $0x330] sm:$0xff] %vm16, 0.0
      %120 = vst.msk [vmem:[#allocation2 + $0x338] sm:$0xff] %vm16, 0.0
      %121 = vst.msk [vmem:[#allocation2 + $0x340] sm:$0xff] %vm16, 0.0
      %122 = vst.msk [vmem:[#allocation2 + $0x348] sm:$0xff] %vm16, 0.0
      %123 = vst.msk [vmem:[#allocation2 + $0x350] sm:$0xff] %vm16, 0.0
      %124 = vst.msk [vmem:[#allocation2 + $0x358] sm:$0xff] %vm16, 0.0
      %125 = vst.msk [vmem:[#allocation2 + $0x360] sm:$0xff] %vm16, 0.0
      %126 = vst.msk [vmem:[#allocation2 + $0x368] sm:$0xff] %vm16, 0.0
      %127 = vst.msk [vmem:[#allocation2 + $0x370] sm:$0xff] %vm16, 0.0
      %128 = vst.msk [vmem:[#allocation2 + $0x378] sm:$0xff] %vm16, 0.0
      %129 = vst.msk [vmem:[#allocation2 + $0x380] sm:$0xff] %vm16, 0.0
      %130 = vst.msk [vmem:[#allocation2 + $0x388] sm:$0xff] %vm16, 0.0
      %131 = vst.msk [vmem:[#allocation2 + $0x390] sm:$0xff] %vm16, 0.0
      %132 = vst.msk [vmem:[#allocation2 + $0x398] sm:$0xff] %vm16, 0.0
      %133 = vst.msk [vmem:[#allocation2 + $0x3a0] sm:$0xff] %vm16, 0.0
      %134 = vst.msk [vmem:[#allocation2 + $0x3a8] sm:$0xff] %vm16, 0.0
      %135 = vst.msk [vmem:[#allocation2 + $0x3b0] sm:$0xff] %vm16, 0.0
      %136 = vst.msk [vmem:[#allocation2 + $0x3b8] sm:$0xff] %vm16, 0.0
      %137 = vst.msk [vmem:[#allocation2 + $0x3c0] sm:$0xff] %vm16, 0.0
      %138 = vst.msk [vmem:[#allocation2 + $0x3c8] sm:$0xff] %vm16, 0.0
      %139 = vst.msk [vmem:[#allocation2 + $0x3d0] sm:$0xff] %vm16, 0.0
      %140 = vst.msk [vmem:[#allocation2 + $0x3d8] sm:$0xff] %vm16, 0.0
      %141 = vst.msk [vmem:[#allocation2 + $0x3e0] sm:$0xff] %vm16, 0.0
      %142 = vst.msk [vmem:[#allocation2 + $0x3e8] sm:$0xff] %vm16, 0.0
      %143 = vst.msk [vmem:[#allocation2 + $0x3f0] sm:$0xff] %vm16, 0.0
      %144 = vst.msk [vmem:[#allocation2 + $0x3f8] sm:$0xff] %vm16, 0.0
      %vm145 = vcmask 0
      %146 = vst.msk [vmem:[#allocation3] sm:$0x1] %vm145, 0.0
    $region13: #{diff_loss.1} parent=1 // pred_fallthru
      _
    %v147 = vld [vmem:[%s0] sm:$0xff]
    %v148 = vld [vmem:[%s0 + $0x8] sm:$0xff]
    %v149 = vld [vmem:[%s1] sm:$0x3]
    %v150 = vmul.f32 %v147, %v147
    %v151 = vmul.f32 %v148, %v148
    %v154 = vcombine.high %v150, %v150
    %v156 = vunpack.c.l.s4 1983009808
    %v157 = vunpack.c.0.s8 %v156
    %v158 = vlaneseq
    %v159 = vshrl.u32 %v158, 7
    %v160 = vsub.s32 %v157, %v159
    %v161 = vrot.slane %v150, %v160
    %v163 = vunpack.c.l.s4 1983009808
    %v164 = vunpack.c.0.s8 %v163
    %v165 = vlaneseq
    %v166 = vshrl.u32 %v165, 7
    %v167 = vsub.s32 %v164, %v166
    %v168 = vrot.slane %v154, %v167
    %v169 = vcombine.high %v161, %v161
    %v170 = vcombine.high %v168, %v168
    %v171 = vcombine.high %v151, %v151
    %v173 = vunpack.c.l.s4 1983009808
    %v174 = vunpack.c.0.s8 %v173
    %v175 = vlaneseq
    %v176 = vshrl.u32 %v175, 7
    %v177 = vsub.s32 %v174, %v176
    %v178 = vrot.slane %v151, %v177
    %v180 = vunpack.c.l.s4 1983009808
    %v181 = vunpack.c.0.s8 %v180
    %v182 = vlaneseq
    %v183 = vshrl.u32 %v182, 7
    %v184 = vsub.s32 %v181, %v183
    %v185 = vrot.slane %v171, %v184
    %v186 = vcombine.high %v178, %v178
    %v187 = vcombine.high %v185, %v185
    %vm196 = vcmask 1041408
    %v197 = vsel %vm196, %v161, 0.0
    %v198 = vsel %vm196, %v169, 0.0
    %v199 = vadd.f32 %v197, %v198
    %v200 = vsel %vm196, %v168, 0.0
    %v201 = vadd.f32 %v199, %v200
    %v202 = vsel %vm196, %v170, 0.0
    %v203 = vadd.f32 %v201, %v202
    %v204 = vsel %vm196, %v178, 0.0
    %v205 = vadd.f32 %v203, %v204
    %v206 = vsel %vm196, %v186, 0.0
    %v207 = vadd.f32 %v205, %v206
    %v208 = vsel %vm196, %v185, 0.0
    %v209 = vadd.f32 %v207, %v208
    %v210 = vsel %vm196, %v187, 0.0
    %v211 = vadd.f32 %v209, %v210
    %212 = vadd.xlane.f32.xlu0 %v211
    %v213 = vpop.xlane.xlu0 %212
    %v214 = vrsqrt.pop %v213
    %v215 = vmul.f32 %v213, %v214
    %vm216 = vcmp.eq.f32.partialorder %v213, inf
    %v217 = vsel %vm216, %v213, %v215
    %vm218 = vcmp.eq.f32.partialorder %v213, 0.0
    %v219 = vand.u32 %v213, 2147483648
    %v220 = vsel %vm218, %v219, %v217
    %v221 = vmul.f32 %v149, %v149
    %vm222 = vcmask 517120
    %v223 = vsel %vm222, %v221, 0.0
    %224 = vadd.xlane.f32.xlu0 %v223
    %v225 = vpop.xlane.xlu0 %224
    %v226 = vrsqrt.pop %v225
    %v227 = vmul.f32 %v225, %v226
    %vm228 = vcmp.eq.f32.partialorder %v225, inf
    %v229 = vsel %vm228, %v225, %v227
    %vm230 = vcmp.eq.f32.partialorder %v225, 0.0
    %v231 = vand.u32 %v225, 2147483648
    %v232 = vsel %vm230, %v231, %v229
    %v233 = vadd.f32 %v220, 1e-06
    %v236 = vunpack.c.l.s4 269488144
    %v237 = vunpack.c.0.s8 %v236
    %v238 = vlaneseq
    %v239 = vshrl.u32 %v238, 7
    %v240 = vsub.s32 %v237, %v239
    %v241 = vrot.slane %v233, %v240
    %v243 = vrcp.pop %v241
    %v244 = vmul.f32 %v147, %v243
    %v245 = vmul.f32 %v148, %v243
    %v246 = vadd.f32 %v232, 1e-06
    %v247 = vrcp.pop %v246
    %v248 = vmul.f32 %v149, %v247
    %v249 = vld [vmem:[#allocation2] sm:$0xff]
    %v250 = vld [vmem:[#allocation2 + $0x8] sm:$0xff]
    %v251 = vld [vmem:[#allocation2 + $0x10] sm:$0xff]
    %v252 = vld [vmem:[#allocation2 + $0x18] sm:$0xff]
    %v253 = vld [vmem:[#allocation2 + $0x20] sm:$0xff]
    %v254 = vld [vmem:[#allocation2 + $0x28] sm:$0xff]
    %v255 = vld [vmem:[#allocation2 + $0x30] sm:$0xff]
    %v256 = vld [vmem:[#allocation2 + $0x38] sm:$0xff]
    %v257 = vld [vmem:[#allocation2 + $0x40] sm:$0xff]
    %v258 = vld [vmem:[#allocation2 + $0x48] sm:$0xff]
    %v259 = vld [vmem:[#allocation2 + $0x50] sm:$0xff]
    %v260 = vld [vmem:[#allocation2 + $0x58] sm:$0xff]
    %v261 = vld [vmem:[#allocation2 + $0x60] sm:$0xff]
    %v262 = vld [vmem:[#allocation2 + $0x68] sm:$0xff]
    %v263 = vld [vmem:[#allocation2 + $0x70] sm:$0xff]
    %v264 = vld [vmem:[#allocation2 + $0x78] sm:$0xff]
    %v265 = vld [vmem:[#allocation2 + $0x80] sm:$0xff]
    %v266 = vld [vmem:[#allocation2 + $0x88] sm:$0xff]
    %v267 = vld [vmem:[#allocation2 + $0x90] sm:$0xff]
    %v268 = vld [vmem:[#allocation2 + $0x98] sm:$0xff]
    %v269 = vld [vmem:[#allocation2 + $0xa0] sm:$0xff]
    %v270 = vld [vmem:[#allocation2 + $0xa8] sm:$0xff]
    %v271 = vld [vmem:[#allocation2 + $0xb0] sm:$0xff]
    %v272 = vld [vmem:[#allocation2 + $0xb8] sm:$0xff]
    %v273 = vld [vmem:[#allocation2 + $0xc0] sm:$0xff]
    %v274 = vld [vmem:[#allocation2 + $0xc8] sm:$0xff]
    %v275 = vld [vmem:[#allocation2 + $0xd0] sm:$0xff]
    %v276 = vld [vmem:[#allocation2 + $0xd8] sm:$0xff]
    %v277 = vld [vmem:[#allocation2 + $0xe0] sm:$0xff]
    %v278 = vld [vmem:[#allocation2 + $0xe8] sm:$0xff]
    %v279 = vld [vmem:[#allocation2 + $0xf0] sm:$0xff]
    %v280 = vld [vmem:[#allocation2 + $0xf8] sm:$0xff]
    %v281 = vld [vmem:[#allocation2 + $0x100] sm:$0xff]
    %v282 = vld [vmem:[#allocation2 + $0x108] sm:$0xff]
    %v283 = vld [vmem:[#allocation2 + $0x110] sm:$0xff]
    %v284 = vld [vmem:[#allocation2 + $0x118] sm:$0xff]
    %v285 = vld [vmem:[#allocation2 + $0x120] sm:$0xff]
    %v286 = vld [vmem:[#allocation2 + $0x128] sm:$0xff]
    %v287 = vld [vmem:[#allocation2 + $0x130] sm:$0xff]
    %v288 = vld [vmem:[#allocation2 + $0x138] sm:$0xff]
    %v289 = vld [vmem:[#allocation2 + $0x140] sm:$0xff]
    %v290 = vld [vmem:[#allocation2 + $0x148] sm:$0xff]
    %v291 = vld [vmem:[#allocation2 + $0x150] sm:$0xff]
    %v292 = vld [vmem:[#allocation2 + $0x158] sm:$0xff]
    %v293 = vld [vmem:[#allocation2 + $0x160] sm:$0xff]
    %v294 = vld [vmem:[#allocation2 + $0x168] sm:$0xff]
    %v295 = vld [vmem:[#allocation2 + $0x170] sm:$0xff]
    %v296 = vld [vmem:[#allocation2 + $0x178] sm:$0xff]
    %v297 = vld [vmem:[#allocation2 + $0x180] sm:$0xff]
    %v298 = vld [vmem:[#allocation2 + $0x188] sm:$0xff]
    %v299 = vld [vmem:[#allocation2 + $0x190] sm:$0xff]
    %v300 = vld [vmem:[#allocation2 + $0x198] sm:$0xff]
    %v301 = vld [vmem:[#allocation2 + $0x1a0] sm:$0xff]
    %v302 = vld [vmem:[#allocation2 + $0x1a8] sm:$0xff]
    %v303 = vld [vmem:[#allocation2 + $0x1b0] sm:$0xff]
    %v304 = vld [vmem:[#allocation2 + $0x1b8] sm:$0xff]
    %v305 = vld [vmem:[#allocation2 + $0x1c0] sm:$0xff]
    %v306 = vld [vmem:[#allocation2 + $0x1c8] sm:$0xff]
    %v307 = vld [vmem:[#allocation2 + $0x1d0] sm:$0xff]
    %v308 = vld [vmem:[#allocation2 + $0x1d8] sm:$0xff]
    %v309 = vld [vmem:[#allocation2 + $0x1e0] sm:$0xff]
    %v310 = vld [vmem:[#allocation2 + $0x1e8] sm:$0xff]
    %v311 = vld [vmem:[#allocation2 + $0x1f0] sm:$0xff]
    %v312 = vld [vmem:[#allocation2 + $0x1f8] sm:$0xff]
    %v313 = vld [vmem:[#allocation2 + $0x200] sm:$0xff]
    %v314 = vld [vmem:[#allocation2 + $0x208] sm:$0xff]
    %v315 = vld [vmem:[#allocation2 + $0x210] sm:$0xff]
    %v316 = vld [vmem:[#allocation2 + $0x218] sm:$0xff]
    %v317 = vld [vmem:[#allocation2 + $0x220] sm:$0xff]
    %v318 = vld [vmem:[#allocation2 + $0x228] sm:$0xff]
    %v319 = vld [vmem:[#allocation2 + $0x230] sm:$0xff]
    %v320 = vld [vmem:[#allocation2 + $0x238] sm:$0xff]
    %v321 = vld [vmem:[#allocation2 + $0x240] sm:$0xff]
    %v322 = vld [vmem:[#allocation2 + $0x248] sm:$0xff]
    %v323 = vld [vmem:[#allocation2 + $0x250] sm:$0xff]
    %v324 = vld [vmem:[#allocation2 + $0x258] sm:$0xff]
    %v325 = vld [vmem:[#allocation2 + $0x260] sm:$0xff]
    %v326 = vld [vmem:[#allocation2 + $0x268] sm:$0xff]
    %v327 = vld [vmem:[#allocation2 + $0x270] sm:$0xff]
    %v328 = vld [vmem:[#allocation2 + $0x278] sm:$0xff]
    %v329 = vld [vmem:[#allocation2 + $0x280] sm:$0xff]
    %v330 = vld [vmem:[#allocation2 + $0x288] sm:$0xff]
    %v331 = vld [vmem:[#allocation2 + $0x290] sm:$0xff]
    %v332 = vld [vmem:[#allocation2 + $0x298] sm:$0xff]
    %v333 = vld [vmem:[#allocation2 + $0x2a0] sm:$0xff]
    %v334 = vld [vmem:[#allocation2 + $0x2a8] sm:$0xff]
    %v335 = vld [vmem:[#allocation2 + $0x2b0] sm:$0xff]
    %v336 = vld [vmem:[#allocation2 + $0x2b8] sm:$0xff]
    %v337 = vld [vmem:[#allocation2 + $0x2c0] sm:$0xff]
    %v338 = vld [vmem:[#allocation2 + $0x2c8] sm:$0xff]
    %v339 = vld [vmem:[#allocation2 + $0x2d0] sm:$0xff]
    %v340 = vld [vmem:[#allocation2 + $0x2d8] sm:$0xff]
    %v341 = vld [vmem:[#allocation2 + $0x2e0] sm:$0xff]
    %v342 = vld [vmem:[#allocation2 + $0x2e8] sm:$0xff]
    %v343 = vld [vmem:[#allocation2 + $0x2f0] sm:$0xff]
    %v344 = vld [vmem:[#allocation2 + $0x2f8] sm:$0xff]
    %v345 = vld [vmem:[#allocation2 + $0x300] sm:$0xff]
    %v346 = vld [vmem:[#allocation2 + $0x308] sm:$0xff]
    %v347 = vld [vmem:[#allocation2 + $0x310] sm:$0xff]
    %v348 = vld [vmem:[#allocation2 + $0x318] sm:$0xff]
    %v349 = vld [vmem:[#allocation2 + $0x320] sm:$0xff]
    %v350 = vld [vmem:[#allocation2 + $0x328] sm:$0xff]
    %v351 = vld [vmem:[#allocation2 + $0x330] sm:$0xff]
    %v352 = vld [vmem:[#allocation2 + $0x338] sm:$0xff]
    %v353 = vld [vmem:[#allocation2 + $0x340] sm:$0xff]
    %v354 = vld [vmem:[#allocation2 + $0x348] sm:$0xff]
    %v355 = vld [vmem:[#allocation2 + $0x350] sm:$0xff]
    %v356 = vld [vmem:[#allocation2 + $0x358] sm:$0xff]
    %v357 = vld [vmem:[#allocation2 + $0x360] sm:$0xff]
    %v358 = vld [vmem:[#allocation2 + $0x368] sm:$0xff]
    %v359 = vld [vmem:[#allocation2 + $0x370] sm:$0xff]
    %v360 = vld [vmem:[#allocation2 + $0x378] sm:$0xff]
    %v361 = vld [vmem:[#allocation2 + $0x380] sm:$0xff]
    %v362 = vld [vmem:[#allocation2 + $0x388] sm:$0xff]
    %v363 = vld [vmem:[#allocation2 + $0x390] sm:$0xff]
    %v364 = vld [vmem:[#allocation2 + $0x398] sm:$0xff]
    %v365 = vld [vmem:[#allocation2 + $0x3a0] sm:$0xff]
    %v366 = vld [vmem:[#allocation2 + $0x3a8] sm:$0xff]
    %v367 = vld [vmem:[#allocation2 + $0x3b0] sm:$0xff]
    %v368 = vld [vmem:[#allocation2 + $0x3b8] sm:$0xff]
    %v369 = vld [vmem:[#allocation2 + $0x3c0] sm:$0xff]
    %v370 = vld [vmem:[#allocation2 + $0x3c8] sm:$0xff]
    %v371 = vld [vmem:[#allocation2 + $0x3d0] sm:$0xff]
    %v372 = vld [vmem:[#allocation2 + $0x3d8] sm:$0xff]
    %v373 = vld [vmem:[#allocation2 + $0x3e0] sm:$0xff]
    %v374 = vld [vmem:[#allocation2 + $0x3e8] sm:$0xff]
    %v375 = vld [vmem:[#allocation2 + $0x3f0] sm:$0xff]
    %v376 = vld [vmem:[#allocation2 + $0x3f8] sm:$0xff]
    %v379 = vcombine.high %v244, %v244
    %v381 = vunpack.c.l.s4 1983009808
    %v382 = vunpack.c.0.s8 %v381
    %v383 = vlaneseq
    %v384 = vshrl.u32 %v383, 7
    %v385 = vsub.s32 %v382, %v384
    %v386 = vrot.slane %v244, %v385
    %v388 = vunpack.c.l.s4 1983009808
    %v389 = vunpack.c.0.s8 %v388
    %v390 = vlaneseq
    %v391 = vshrl.u32 %v390, 7
    %v392 = vsub.s32 %v389, %v391
    %v393 = vrot.slane %v379, %v392
    %v394 = vcombine.high %v386, %v386
    %v395 = vcombine.high %v393, %v393
    %v396 = vcombine.high %v245, %v245
    %v398 = vunpack.c.l.s4 1983009808
    %v399 = vunpack.c.0.s8 %v398
    %v400 = vlaneseq
    %v401 = vshrl.u32 %v400, 7
    %v402 = vsub.s32 %v399, %v401
    %v403 = vrot.slane %v245, %v402
    %v405 = vunpack.c.l.s4 1983009808
    %v406 = vunpack.c.0.s8 %v405
    %v407 = vlaneseq
    %v408 = vshrl.u32 %v407, 7
    %v409 = vsub.s32 %v406, %v408
    %v410 = vrot.slane %v396, %v409
    %v411 = vcombine.high %v403, %v403
    %v412 = vcombine.high %v410, %v410
    %421 = vxpose.xlu0.b32.start [1/16] %v386, 128
    %422 = vxpose.xlu0.b32.cont [2/16] 0.0, 128
    %423 = vxpose.xlu0.b32.cont [3/16] 0.0, 128
    %424 = vxpose.xlu0.b32.cont [4/16] 0.0, 128
    %425 = vxpose.xlu0.b32.cont [5/16] 0.0, 128
    %426 = vxpose.xlu0.b32.cont [6/16] 0.0, 128
    %427 = vxpose.xlu0.b32.cont [7/16] 0.0, 128
    %428 = vxpose.xlu0.b32.cont [8/16] 0.0, 128
    %429 = vxpose.xlu0.b32.cont [9/16] 0.0, 128
    %430 = vxpose.xlu0.b32.cont [10/16] 0.0, 128
    %431 = vxpose.xlu0.b32.cont [11/16] 0.0, 128
    %432 = vxpose.xlu0.b32.cont [12/16] 0.0, 128
    %433 = vxpose.xlu0.b32.cont [13/16] 0.0, 128
    %434 = vxpose.xlu0.b32.cont [14/16] 0.0, 128
    %435 = vxpose.xlu0.b32.cont [15/16] 0.0, 128
    %436 = vxpose.xlu0.b32.end [16/16] 0.0, 128
    %v437 = vpop.trf.xlu0
    %v438 = vpop.trf.xlu0
    %v439 = vpop.trf.xlu0
    %v440 = vpop.trf.xlu0
    %v441 = vpop.trf.xlu0
    %v442 = vpop.trf.xlu0
    %v443 = vpop.trf.xlu0
    %v444 = vpop.trf.xlu0
    %v445 = vpop.trf.xlu0
    %v446 = vpop.trf.xlu0
    %v447 = vpop.trf.xlu0
    %v448 = vpop.trf.xlu0
    %v449 = vpop.trf.xlu0
    %v450 = vpop.trf.xlu0
    %v451 = vpop.trf.xlu0
    %v452 = vpop.trf.xlu0
    %453 = vxpose.xlu0.b32.start [1/16] %v394, 128
    %454 = vxpose.xlu0.b32.cont [2/16] 0.0, 128
    %455 = vxpose.xlu0.b32.cont [3/16] 0.0, 128
    %456 = vxpose.xlu0.b32.cont [4/16] 0.0, 128
    %457 = vxpose.xlu0.b32.cont [5/16] 0.0, 128
    %458 = vxpose.xlu0.b32.cont [6/16] 0.0, 128
    %459 = vxpose.xlu0.b32.cont [7/16] 0.0, 128
    %460 = vxpose.xlu0.b32.cont [8/16] 0.0, 128
    %461 = vxpose.xlu0.b32.cont [9/16] 0.0, 128
    %462 = vxpose.xlu0.b32.cont [10/16] 0.0, 128
    %463 = vxpose.xlu0.b32.cont [11/16] 0.0, 128
    %464 = vxpose.xlu0.b32.cont [12/16] 0.0, 128
    %465 = vxpose.xlu0.b32.cont [13/16] 0.0, 128
    %466 = vxpose.xlu0.b32.cont [14/16] 0.0, 128
    %467 = vxpose.xlu0.b32.cont [15/16] 0.0, 128
    %468 = vxpose.xlu0.b32.end [16/16] 0.0, 128
    %v469 = vpop.trf.xlu0
    %v470 = vpop.trf.xlu0
    %v471 = vpop.trf.xlu0
    %v472 = vpop.trf.xlu0
    %v473 = vpop.trf.xlu0
    %v474 = vpop.trf.xlu0
    %v475 = vpop.trf.xlu0
    %v476 = vpop.trf.xlu0
    %v477 = vpop.trf.xlu0
    %v478 = vpop.trf.xlu0
    %v479 = vpop.trf.xlu0
    %v480 = vpop.trf.xlu0
    %v481 = vpop.trf.xlu0
    %v482 = vpop.trf.xlu0
    %v483 = vpop.trf.xlu0
    %v484 = vpop.trf.xlu0
    %485 = vxpose.xlu0.b32.start [1/16] %v393, 128
    %486 = vxpose.xlu0.b32.cont [2/16] 0.0, 128
    %487 = vxpose.xlu0.b32.cont [3/16] 0.0, 128
    %488 = vxpose.xlu0.b32.cont [4/16] 0.0, 128
    %489 = vxpose.xlu0.b32.cont [5/16] 0.0, 128
    %490 = vxpose.xlu0.b32.cont [6/16] 0.0, 128
    %491 = vxpose.xlu0.b32.cont [7/16] 0.0, 128
    %492 = vxpose.xlu0.b32.cont [8/16] 0.0, 128
    %493 = vxpose.xlu0.b32.cont [9/16] 0.0, 128
    %494 = vxpose.xlu0.b32.cont [10/16] 0.0, 128
    %495 = vxpose.xlu0.b32.cont [11/16] 0.0, 128
    %496 = vxpose.xlu0.b32.cont [12/16] 0.0, 128
    %497 = vxpose.xlu0.b32.cont [13/16] 0.0, 128
    %498 = vxpose.xlu0.b32.cont [14/16] 0.0, 128
    %499 = vxpose.xlu0.b32.cont [15/16] 0.0, 128
    %500 = vxpose.xlu0.b32.end [16/16] 0.0, 128
    %v501 = vpop.trf.xlu0
    %v502 = vpop.trf.xlu0
    %v503 = vpop.trf.xlu0
    %v504 = vpop.trf.xlu0
    %v505 = vpop.trf.xlu0
    %v506 = vpop.trf.xlu0
    %v507 = vpop.trf.xlu0
    %v508 = vpop.trf.xlu0
    %v509 = vpop.trf.xlu0
    %v510 = vpop.trf.xlu0
    %v511 = vpop.trf.xlu0
    %v512 = vpop.trf.xlu0
    %v513 = vpop.trf.xlu0
    %v514 = vpop.trf.xlu0
    %v515 = vpop.trf.xlu0
    %v516 = vpop.trf.xlu0
    %517 = vxpose.xlu0.b32.start [1/16] %v395, 128
    %518 = vxpose.xlu0.b32.cont [2/16] 0.0, 128
    %519 = vxpose.xlu0.b32.cont [3/16] 0.0, 128
    %520 = vxpose.xlu0.b32.cont [4/16] 0.0, 128
    %521 = vxpose.xlu0.b32.cont [5/16] 0.0, 128
    %522 = vxpose.xlu0.b32.cont [6/16] 0.0, 128
    %523 = vxpose.xlu0.b32.cont [7/16] 0.0, 128
    %524 = vxpose.xlu0.b32.cont [8/16] 0.0, 128
    %525 = vxpose.xlu0.b32.cont [9/16] 0.0, 128
    %526 = vxpose.xlu0.b32.cont [10/16] 0.0, 128
    %527 = vxpose.xlu0.b32.cont [11/16] 0.0, 128
    %528 = vxpose.xlu0.b32.cont [12/16] 0.0, 128
    %529 = vxpose.xlu0.b32.cont [13/16] 0.0, 128
    %530 = vxpose.xlu0.b32.cont [14/16] 0.0, 128
    %531 = vxpose.xlu0.b32.cont [15/16] 0.0, 128
    %532 = vxpose.xlu0.b32.end [16/16] 0.0, 128
    %v533 = vpop.trf.xlu0
    %v534 = vpop.trf.xlu0
    %v535 = vpop.trf.xlu0
    %v536 = vpop.trf.xlu0
    %v537 = vpop.trf.xlu0
    %v538 = vpop.trf.xlu0
    %v539 = vpop.trf.xlu0
    %v540 = vpop.trf.xlu0
    %v541 = vpop.trf.xlu0
    %v542 = vpop.trf.xlu0
    %v543 = vpop.trf.xlu0
    %v544 = vpop.trf.xlu0
    %v545 = vpop.trf.xlu0
    %v546 = vpop.trf.xlu0
    %v547 = vpop.trf.xlu0
    %v548 = vpop.trf.xlu0
    %549 = vxpose.xlu0.b32.start [1/16] %v403, 128
    %550 = vxpose.xlu0.b32.cont [2/16] 0.0, 128
    %551 = vxpose.xlu0.b32.cont [3/16] 0.0, 128
    %552 = vxpose.xlu0.b32.cont [4/16] 0.0, 128
    %553 = vxpose.xlu0.b32.cont [5/16] 0.0, 128
    %554 = vxpose.xlu0.b32.cont [6/16] 0.0, 128
    %555 = vxpose.xlu0.b32.cont [7/16] 0.0, 128
    %556 = vxpose.xlu0.b32.cont [8/16] 0.0, 128
    %557 = vxpose.xlu0.b32.cont [9/16] 0.0, 128
    %558 = vxpose.xlu0.b32.cont [10/16] 0.0, 128
    %559 = vxpose.xlu0.b32.cont [11/16] 0.0, 128
    %560 = vxpose.xlu0.b32.cont [12/16] 0.0, 128
    %561 = vxpose.xlu0.b32.cont [13/16] 0.0, 128
    %562 = vxpose.xlu0.b32.cont [14/16] 0.0, 128
    %563 = vxpose.xlu0.b32.cont [15/16] 0.0, 128
    %564 = vxpose.xlu0.b32.end [16/16] 0.0, 128
    %v565 = vpop.trf.xlu0
    %v566 = vpop.trf.xlu0
    %v567 = vpop.trf.xlu0
    %v568 = vpop.trf.xlu0
    %v569 = vpop.trf.xlu0
    %v570 = vpop.trf.xlu0
    %v571 = vpop.trf.xlu0
    %v572 = vpop.trf.xlu0
    %v573 = vpop.trf.xlu0
    %v574 = vpop.trf.xlu0
    %v575 = vpop.trf.xlu0
    %v576 = vpop.trf.xlu0
    %v577 = vpop.trf.xlu0
    %v578 = vpop.trf.xlu0
    %v579 = vpop.trf.xlu0
    %v580 = vpop.trf.xlu0
    %581 = vxpose.xlu0.b32.start [1/16] %v411, 128
    %582 = vxpose.xlu0.b32.cont [2/16] 0.0, 128
    %583 = vxpose.xlu0.b32.cont [3/16] 0.0, 128
    %584 = vxpose.xlu0.b32.cont [4/16] 0.0, 128
    %585 = vxpose.xlu0.b32.cont [5/16] 0.0, 128
    %586 = vxpose.xlu0.b32.cont [6/16] 0.0, 128
    %587 = vxpose.xlu0.b32.cont [7/16] 0.0, 128
    %588 = vxpose.xlu0.b32.cont [8/16] 0.0, 128
    %589 = vxpose.xlu0.b32.cont [9/16] 0.0, 128
    %590 = vxpose.xlu0.b32.cont [10/16] 0.0, 128
    %591 = vxpose.xlu0.b32.cont [11/16] 0.0, 128
    %592 = vxpose.xlu0.b32.cont [12/16] 0.0, 128
    %593 = vxpose.xlu0.b32.cont [13/16] 0.0, 128
    %594 = vxpose.xlu0.b32.cont [14/16] 0.0, 128
    %595 = vxpose.xlu0.b32.cont [15/16] 0.0, 128
    %596 = vxpose.xlu0.b32.end [16/16] 0.0, 128
    %v597 = vpop.trf.xlu0
    %v598 = vpop.trf.xlu0
    %v599 = vpop.trf.xlu0
    %v600 = vpop.trf.xlu0
    %v601 = vpop.trf.xlu0
    %v602 = vpop.trf.xlu0
    %v603 = vpop.trf.xlu0
    %v604 = vpop.trf.xlu0
    %v605 = vpop.trf.xlu0
    %v606 = vpop.trf.xlu0
    %v607 = vpop.trf.xlu0
    %v608 = vpop.trf.xlu0
    %v609 = vpop.trf.xlu0
    %v610 = vpop.trf.xlu0
    %v611 = vpop.trf.xlu0
    %v612 = vpop.trf.xlu0
    %613 = vxpose.xlu0.b32.start [1/16] %v410, 128
    %614 = vxpose.xlu0.b32.cont [2/16] 0.0, 128
    %615 = vxpose.xlu0.b32.cont [3/16] 0.0, 128
    %616 = vxpose.xlu0.b32.cont [4/16] 0.0, 128
    %617 = vxpose.xlu0.b32.cont [5/16] 0.0, 128
    %618 = vxpose.xlu0.b32.cont [6/16] 0.0, 128
    %619 = vxpose.xlu0.b32.cont [7/16] 0.0, 128
    %620 = vxpose.xlu0.b32.cont [8/16] 0.0, 128
    %621 = vxpose.xlu0.b32.cont [9/16] 0.0, 128
    %622 = vxpose.xlu0.b32.cont [10/16] 0.0, 128
    %623 = vxpose.xlu0.b32.cont [11/16] 0.0, 128
    %624 = vxpose.xlu0.b32.cont [12/16] 0.0, 128
    %625 = vxpose.xlu0.b32.cont [13/16] 0.0, 128
    %626 = vxpose.xlu0.b32.cont [14/16] 0.0, 128
    %627 = vxpose.xlu0.b32.cont [15/16] 0.0, 128
    %628 = vxpose.xlu0.b32.end [16/16] 0.0, 128
    %v629 = vpop.trf.xlu0
    %v630 = vpop.trf.xlu0
    %v631 = vpop.trf.xlu0
    %v632 = vpop.trf.xlu0
    %v633 = vpop.trf.xlu0
    %v634 = vpop.trf.xlu0
    %v635 = vpop.trf.xlu0
    %v636 = vpop.trf.xlu0
    %v637 = vpop.trf.xlu0
    %v638 = vpop.trf.xlu0
    %v639 = vpop.trf.xlu0
    %v640 = vpop.trf.xlu0
    %v641 = vpop.trf.xlu0
    %v642 = vpop.trf.xlu0
    %v643 = vpop.trf.xlu0
    %v644 = vpop.trf.xlu0
    %645 = vxpose.xlu0.b32.start [1/16] %v412, 128
    %646 = vxpose.xlu0.b32.cont [2/16] 0.0, 128
    %647 = vxpose.xlu0.b32.cont [3/16] 0.0, 128
    %648 = vxpose.xlu0.b32.cont [4/16] 0.0, 128
    %649 = vxpose.xlu0.b32.cont [5/16] 0.0, 128
    %650 = vxpose.xlu0.b32.cont [6/16] 0.0, 128
    %651 = vxpose.xlu0.b32.cont [7/16] 0.0, 128
    %652 = vxpose.xlu0.b32.cont [8/16] 0.0, 128
    %653 = vxpose.xlu0.b32.cont [9/16] 0.0, 128
    %654 = vxpose.xlu0.b32.cont [10/16] 0.0, 128
    %655 = vxpose.xlu0.b32.cont [11/16] 0.0, 128
    %656 = vxpose.xlu0.b32.cont [12/16] 0.0, 128
    %657 = vxpose.xlu0.b32.cont [13/16] 0.0, 128
    %658 = vxpose.xlu0.b32.cont [14/16] 0.0, 128
    %659 = vxpose.xlu0.b32.cont [15/16] 0.0, 128
    %660 = vxpose.xlu0.b32.end [16/16] 0.0, 128
    %v661 = vpop.trf.xlu0
    %v662 = vpop.trf.xlu0
    %v663 = vpop.trf.xlu0
    %v664 = vpop.trf.xlu0
    %v665 = vpop.trf.xlu0
    %v666 = vpop.trf.xlu0
    %v667 = vpop.trf.xlu0
    %v668 = vpop.trf.xlu0
    %v669 = vpop.trf.xlu0
    %v670 = vpop.trf.xlu0
    %v671 = vpop.trf.xlu0
    %v672 = vpop.trf.xlu0
    %v673 = vpop.trf.xlu0
    %v674 = vpop.trf.xlu0
    %v675 = vpop.trf.xlu0
    %v676 = vpop.trf.xlu0
    %vm677 = vcmask 15360
    %v679 = vsel %vm677, %v437, 0
    %v682 = vsel %vm677, %v438, 0
    %v685 = vsel %vm677, %v439, 0
    %v688 = vsel %vm677, %v440, 0
    %v691 = vsel %vm677, %v441, 0
    %v694 = vsel %vm677, %v442, 0
    %v697 = vsel %vm677, %v443, 0
    %v700 = vsel %vm677, %v444, 0
    %v703 = vsel %vm677, %v445, 0
    %v706 = vsel %vm677, %v446, 0
    %v709 = vsel %vm677, %v447, 0
    %v712 = vsel %vm677, %v448, 0
    %v715 = vsel %vm677, %v449, 0
    %v718 = vsel %vm677, %v450, 0
    %v721 = vsel %vm677, %v451, 0
    %v724 = vsel %vm677, %v452, 0
    %v727 = vsel %vm677, %v469, 0
    %v730 = vsel %vm677, %v470, 0
    %v733 = vsel %vm677, %v471, 0
    %v736 = vsel %vm677, %v472, 0
    %v739 = vsel %vm677, %v473, 0
    %v742 = vsel %vm677, %v474, 0
    %v745 = vsel %vm677, %v475, 0
    %v748 = vsel %vm677, %v476, 0
    %v751 = vsel %vm677, %v477, 0
    %v754 = vsel %vm677, %v478, 0
    %v757 = vsel %vm677, %v479, 0
    %v760 = vsel %vm677, %v480, 0
    %v763 = vsel %vm677, %v481, 0
    %v766 = vsel %vm677, %v482, 0
    %v769 = vsel %vm677, %v483, 0
    %v772 = vsel %vm677, %v484, 0
    %v775 = vsel %vm677, %v501, 0
    %v778 = vsel %vm677, %v502, 0
    %v781 = vsel %vm677, %v503, 0
    %v784 = vsel %vm677, %v504, 0
    %v787 = vsel %vm677, %v505, 0
    %v790 = vsel %vm677, %v506, 0
    %v793 = vsel %vm677, %v507, 0
    %v796 = vsel %vm677, %v508, 0
    %v799 = vsel %vm677, %v509, 0
    %v802 = vsel %vm677, %v510, 0
    %v805 = vsel %vm677, %v511, 0
    %v808 = vsel %vm677, %v512, 0
    %v811 = vsel %vm677, %v513, 0
    %v814 = vsel %vm677, %v514, 0
    %v817 = vsel %vm677, %v515, 0
    %v820 = vsel %vm677, %v516, 0
    %v823 = vsel %vm677, %v533, 0
    %v826 = vsel %vm677, %v534, 0
    %v829 = vsel %vm677, %v535, 0
    %v832 = vsel %vm677, %v536, 0
    %v835 = vsel %vm677, %v537, 0
    %v838 = vsel %vm677, %v538, 0
    %v841 = vsel %vm677, %v539, 0
    %v844 = vsel %vm677, %v540, 0
    %v847 = vsel %vm677, %v541, 0
    %v850 = vsel %vm677, %v542, 0
    %v853 = vsel %vm677, %v543, 0
    %v856 = vsel %vm677, %v544, 0
    %v859 = vsel %vm677, %v545, 0
    %v862 = vsel %vm677, %v546, 0
    %v865 = vsel %vm677, %v547, 0
    %v868 = vsel %vm677, %v548, 0
    %v871 = vsel %vm677, %v565, 0
    %v874 = vsel %vm677, %v566, 0
    %v877 = vsel %vm677, %v567, 0
    %v880 = vsel %vm677, %v568, 0
    %v883 = vsel %vm677, %v569, 0
    %v886 = vsel %vm677, %v570, 0
    %v889 = vsel %vm677, %v571, 0
    %v892 = vsel %vm677, %v572, 0
    %v895 = vsel %vm677, %v573, 0
    %v898 = vsel %vm677, %v574, 0
    %v901 = vsel %vm677, %v575, 0
    %v904 = vsel %vm677, %v576, 0
    %v907 = vsel %vm677, %v577, 0
    %v910 = vsel %vm677, %v578, 0
    %v913 = vsel %vm677, %v579, 0
    %v916 = vsel %vm677, %v580, 0
    %v919 = vsel %vm677, %v597, 0
    %v922 = vsel %vm677, %v598, 0
    %v925 = vsel %vm677, %v599, 0
    %v928 = vsel %vm677, %v600, 0
    %v931 = vsel %vm677, %v601, 0
    %v934 = vsel %vm677, %v602, 0
    %v937 = vsel %vm677, %v603, 0
    %v940 = vsel %vm677, %v604, 0
    %v943 = vsel %vm677, %v605, 0
    %v946 = vsel %vm677, %v606, 0
    %v949 = vsel %vm677, %v607, 0
    %v952 = vsel %vm677, %v608, 0
    %v955 = vsel %vm677, %v609, 0
    %v958 = vsel %vm677, %v610, 0
    %v961 = vsel %vm677, %v611, 0
    %v964 = vsel %vm677, %v612, 0
    %v967 = vsel %vm677, %v629, 0
    %v970 = vsel %vm677, %v630, 0
    %v973 = vsel %vm677, %v631, 0
    %v976 = vsel %vm677, %v632, 0
    %v979 = vsel %vm677, %v633, 0
    %v982 = vsel %vm677, %v634, 0
    %v985 = vsel %vm677, %v635, 0
    %v988 = vsel %vm677, %v636, 0
    %v991 = vsel %vm677, %v637, 0
    %v994 = vsel %vm677, %v638, 0
    %v997 = vsel %vm677, %v639, 0
    %v1000 = vsel %vm677, %v640, 0
    %v1003 = vsel %vm677, %v641, 0
    %v1006 = vsel %vm677, %v642, 0
    %v1009 = vsel %vm677, %v643, 0
    %v1012 = vsel %vm677, %v644, 0
    %v1015 = vsel %vm677, %v661, 0
    %v1018 = vsel %vm677, %v662, 0
    %v1021 = vsel %vm677, %v663, 0
    %v1024 = vsel %vm677, %v664, 0
    %v1027 = vsel %vm677, %v665, 0
    %v1030 = vsel %vm677, %v666, 0
    %v1033 = vsel %vm677, %v667, 0
    %v1036 = vsel %vm677, %v668, 0
    %v1039 = vsel %vm677, %v669, 0
    %v1042 = vsel %vm677, %v670, 0
    %v1045 = vsel %vm677, %v671, 0
    %v1048 = vsel %vm677, %v672, 0
    %v1051 = vsel %vm677, %v673, 0
    %v1054 = vsel %vm677, %v674, 0
    %v1057 = vsel %vm677, %v675, 0
    %v1060 = vsel %vm677, %v676, 0
    %v1063 = vsel %vm196, %v248, 0
    %1065 = vmatprep.subr.mxu0 0.0
    %1066 = vmatpush1.msra.mxu0 %v1063
    %1067 = vmatprep.subr.mxu0 0.0
    %1068 = vmatpush1.msra.mxu0 0.0
    %1069 = vmatprep.subr.mxu0 0.0
    %1070 = vmatpush1.msra.mxu0 0.0
    %1071 = vmatprep.subr.mxu0 0.0
    %1072 = vmatpush1.msra.mxu0 0.0
    %1073 = vmatprep.subr.mxu0 0.0
    %1074 = vmatpush1.msra.mxu0 0.0
    %1075 = vmatprep.subr.mxu0 0.0
    %1076 = vmatpush1.msra.mxu0 0.0
    %1077 = vmatprep.subr.mxu0 0.0
    %1078 = vmatpush1.msra.mxu0 0.0
    %1079 = vmatprep.subr.mxu0 0.0
    %1080 = vmatpush1.msra.mxu0 0.0
    %1081 = vmatprep.subr.mxu0 0.0
    %1082 = vmatpush1.msra.mxu0 0.0
    %1083 = vmatprep.subr.mxu0 0.0
    %1084 = vmatpush1.msra.mxu0 0.0
    %1085 = vmatprep.subr.mxu0 0.0
    %1086 = vmatpush1.msra.mxu0 0.0
    %1087 = vmatprep.subr.mxu0 0.0
    %1088 = vmatpush1.msra.mxu0 0.0
    %1089 = vmatprep.subr.mxu0 0.0
    %1090 = vmatpush1.msra.mxu0 0.0
    %1091 = vmatprep.subr.mxu0 0.0
    %1092 = vmatpush1.msra.mxu0 0.0
    %1093 = vmatprep.subr.mxu0 0.0
    %1094 = vmatpush1.msra.mxu0 0.0
    %1095 = vmatprep.subr.mxu0 0.0
    %1096 = vmatpush1.msra.mxu0 0.0
    %1097 = vmatprep.subr.mxu0 0.0
    %1098 = vmatpush1.msra.mxu0 0.0
    %1099 = vmatprep.subr.mxu0 0.0
    %1100 = vmatpush1.msra.mxu0 0.0
    %1101 = vmatprep.subr.mxu0 0.0
    %1102 = vmatpush1.msra.mxu0 0.0
    %1103 = vmatprep.subr.mxu0 0.0
    %1104 = vmatpush1.msra.mxu0 0.0
    %1105 = vmatprep.subr.mxu0 0.0
    %1106 = vmatpush1.msra.mxu0 0.0
    %1107 = vmatprep.subr.mxu0 0.0
    %1108 = vmatpush1.msra.mxu0 0.0
    %1109 = vmatprep.subr.mxu0 0.0
    %1110 = vmatpush1.msra.mxu0 0.0
    %1111 = vmatprep.subr.mxu0 0.0
    %1112 = vmatpush1.msra.mxu0 0.0
    %1113 = vmatprep.subr.mxu0 0.0
    %1114 = vmatpush1.msra.mxu0 0.0
    %1115 = vmatprep.subr.mxu0 0.0
    %1116 = vmatpush1.msra.mxu0 0.0
    %1117 = vmatprep.subr.mxu0 0.0
    %1118 = vmatpush1.msra.mxu0 0.0
    %1119 = vmatprep.subr.mxu0 0.0
    %1120 = vmatpush1.msra.mxu0 0.0
    %1121 = vmatprep.subr.mxu0 0.0
    %1122 = vmatpush1.msra.mxu0 0.0
    %1123 = vmatprep.subr.mxu0 0.0
    %1124 = vmatpush1.msra.mxu0 0.0
    %1125 = vmatprep.subr.mxu0 0.0
    %1126 = vmatpush1.msra.mxu0 0.0
    %1127 = vmatprep.subr.mxu0 0.0
    %1128 = vmatpush1.msra.mxu0 0.0
    %1129 = vmatprep.mubr.f32.mxu0 0.0
    %1130 = vmatmul.mubr.f32.gmra.mrb[0].mxu0 %v679
    %v1131 = vpop.f32.mrb[0].mxu0
    %v1132 = vadd.f32 0.0, %v1131
    %v1133 = vpop.f32.mrb[0].mxu0
    %1134 = vmatprep.mubr.f32.mxu0 0.0
    %1135 = vmatmul.mubr.f32.gmra.mrb[0].mxu0 %v682
    %v1136 = vpop.f32.mrb[0].mxu0
    %v1137 = vadd.f32 0.0, %v1136
    %v1138 = vpop.f32.mrb[0].mxu0
    %1139 = vmatprep.mubr.f32.mxu0 0.0
    %1140 = vmatmul.mubr.f32.gmra.mrb[0].mxu0 %v685
    %v1141 = vpop.f32.mrb[0].mxu0
    %v1142 = vadd.f32 0.0, %v1141
    %v1143 = vpop.f32.mrb[0].mxu0
    %1144 = vmatprep.mubr.f32.mxu0 0.0
    %1145 = vmatmul.mubr.f32.gmra.mrb[0].mxu0 %v688
    %v1146 = vpop.f32.mrb[0].mxu0
    %v1147 = vadd.f32 0.0, %v1146
    %v1148 = vpop.f32.mrb[0].mxu0
    %1149 = vmatprep.mubr.f32.mxu0 0.0
    %1150 = vmatmul.mubr.f32.gmra.mrb[0].mxu0 %v691
    %v1151 = vpop.f32.mrb[0].mxu0
    %v1152 = vadd.f32 0.0, %v1151
    %v1153 = vpop.f32.mrb[0].mxu0
    %1154 = vmatprep.mubr.f32.mxu0 0.0
    %1155 = vmatmul.mubr.f32.gmra.mrb[0].mxu0 %v694
    %v1156 = vpop.f32.mrb[0].mxu0
    %v1157 = vadd.f32 0.0, %v1156
    %v1158 = vpop.f32.mrb[0].mxu0
    %1159 = vmatprep.mubr.f32.mxu0 0.0
    %1160 = vmatmul.mubr.f32.gmra.mrb[0].mxu0 %v697
    %v1161 = vpop.f32.mrb[0].mxu0
    %v1162 = vadd.f32 0.0, %v1161
    %v1163 = vpop.f32.mrb[0].mxu0
    %1164 = vmatprep.mubr.f32.mxu0 0.0
    %1165 = vmatmul.mubr.f32.gmra.mrb[0].mxu0 %v700
    %v1166 = vpop.f32.mrb[0].mxu0
    %v1167 = vadd.f32 0.0, %v1166
    %v1168 = vpop.f32.mrb[0].mxu0
    %1169 = vmatprep.mubr.f32.mxu0 0.0
    %1170 = vmatmul.mubr.f32.gmra.mrb[0].mxu0 %v703
    %v1171 = vpop.f32.mrb[0].mxu0
    %v1172 = vadd.f32 0.0, %v1171
    %v1173 = vpop.f32.mrb[0].mxu0
    %1174 = vmatprep.mubr.f32.mxu0 0.0
    %1175 = vmatmul.mubr.f32.gmra.mrb[0].mxu0 %v706
    %v1176 = vpop.f32.mrb[0].mxu0
    %v1177 = vadd.f32 0.0, %v1176
    %v1178 = vpop.f32.mrb[0].mxu0
    %1179 = vmatprep.mubr.f32.mxu0 0.0
    %1180 = vmatmul.mubr.f32.gmra.mrb[0].mxu0 %v709
    %v1181 = vpop.f32.mrb[0].mxu0
    %v1182 = vadd.f32 0.0, %v1181
    %v1183 = vpop.f32.mrb[0].mxu0
    %1184 = vmatprep.mubr.f32.mxu0 0.0
    %1185 = vmatmul.mubr.f32.gmra.mrb[0].mxu0 %v712
    %v1186 = vpop.f32.mrb[0].mxu0
    %v1187 = vadd.f32 0.0, %v1186
    %v1188 = vpop.f32.mrb[0].mxu0
    %1189 = vmatprep.mubr.f32.mxu0 0.0
    %1190 = vmatmul.mubr.f32.gmra.mrb[0].mxu0 %v715
    %v1191 = vpop.f32.mrb[0].mxu0
    %v1192 = vadd.f32 0.0, %v1191
    %v1193 = vpop.f32.mrb[0].mxu0
    %1194 = vmatprep.mubr.f32.mxu0 0.0
    %1195 = vmatmul.mubr.f32.gmra.mrb[0].mxu0 %v718
    %v1196 = vpop.f32.mrb[0].mxu0
    %v1197 = vadd.f32 0.0, %v1196
    %v1198 = vpop.f32.mrb[0].mxu0
    %1199 = vmatprep.mubr.f32.mxu0 0.0
    %1200 = vmatmul.mubr.f32.gmra.mrb[0].mxu0 %v721
    %v1201 = vpop.f32.mrb[0].mxu0
    %v1202 = vadd.f32 0.0, %v1201
    %v1203 = vpop.f32.mrb[0].mxu0
    %1204 = vmatprep.mubr.f32.mxu0 0.0
    %1205 = vmatmul.mubr.f32.gmra.mrb[0].mxu0 %v724
    %v1206 = vpop.f32.mrb[0].mxu0
    %v1207 = vadd.f32 0.0, %v1206
    %v1208 = vpop.f32.mrb[0].mxu0
    %1209 = vmatprep.mubr.f32.mxu0 0.0
    %1210 = vmatmul.mubr.f32.gmra.mrb[0].mxu0 %v727
    %v1211 = vpop.f32.mrb[0].mxu0
    %v1212 = vadd.f32 0.0, %v1211
    %v1213 = vpop.f32.mrb[0].mxu0
    %1214 = vmatprep.mubr.f32.mxu0 0.0
    %1215 = vmatmul.mubr.f32.gmra.mrb[0].mxu0 %v730
    %v1216 = vpop.f32.mrb[0].mxu0
    %v1217 = vadd.f32 0.0, %v1216
    %v1218 = vpop.f32.mrb[0].mxu0
    %1219 = vmatprep.mubr.f32.mxu0 0.0
    %1220 = vmatmul.mubr.f32.gmra.mrb[0].mxu0 %v733
    %v1221 = vpop.f32.mrb[0].mxu0
    %v1222 = vadd.f32 0.0, %v1221
    %v1223 = vpop.f32.mrb[0].mxu0
    %1224 = vmatprep.mubr.f32.mxu0 0.0
    %1225 = vmatmul.mubr.f32.gmra.mrb[0].mxu0 %v736
    %v1226 = vpop.f32.mrb[0].mxu0
    %v1227 = vadd.f32 0.0, %v1226
    %v1228 = vpop.f32.mrb[0].mxu0
    %1229 = vmatprep.mubr.f32.mxu0 0.0
    %1230 = vmatmul.mubr.f32.gmra.mrb[0].mxu0 %v739
    %v1231 = vpop.f32.mrb[0].mxu0
    %v1232 = vadd.f32 0.0, %v1231
    %v1233 = vpop.f32.mrb[0].mxu0
    %1234 = vmatprep.mubr.f32.mxu0 0.0
    %1235 = vmatmul.mubr.f32.gmra.mrb[0].mxu0 %v742
    %v1236 = vpop.f32.mrb[0].mxu0
    %v1237 = vadd.f32 0.0, %v1236
    %v1238 = vpop.f32.mrb[0].mxu0
    %1239 = vmatprep.mubr.f32.mxu0 0.0
    %1240 = vmatmul.mubr.f32.gmra.mrb[0].mxu0 %v745
    %v1241 = vpop.f32.mrb[0].mxu0
    %v1242 = vadd.f32 0.0, %v1241
    %v1243 = vpop.f32.mrb[0].mxu0
    %1244 = vmatprep.mubr.f32.mxu0 0.0
    %1245 = vmatmul.mubr.f32.gmra.mrb[0].mxu0 %v748
    %v1246 = vpop.f32.mrb[0].mxu0
    %v1247 = vadd.f32 0.0, %v1246
    %v1248 = vpop.f32.mrb[0].mxu0
    %1249 = vmatprep.mubr.f32.mxu0 0.0
    %1250 = vmatmul.mubr.f32.gmra.mrb[0].mxu0 %v751
    %v1251 = vpop.f32.mrb[0].mxu0
    %v1252 = vadd.f32 0.0, %v1251
    %v1253 = vpop.f32.mrb[0].mxu0
    %1254 = vmatprep.mubr.f32.mxu0 0.0
    %1255 = vmatmul.mubr.f32.gmra.mrb[0].mxu0 %v754
    %v1256 = vpop.f32.mrb[0].mxu0
    %v1257 = vadd.f32 0.0, %v1256
    %v1258 = vpop.f32.mrb[0].mxu0
    %1259 = vmatprep.mubr.f32.mxu0 0.0
    %1260 = vmatmul.mubr.f32.gmra.mrb[0].mxu0 %v757
    %v1261 = vpop.f32.mrb[0].mxu0
    %v1262 = vadd.f32 0.0, %v1261
    %v1263 = vpop.f32.mrb[0].mxu0
    %1264 = vmatprep.mubr.f32.mxu0 0.0
    %1265 = vmatmul.mubr.f32.gmra.mrb[0].mxu0 %v760
    %v1266 = vpop.f32.mrb[0].mxu0
    %v1267 = vadd.f32 0.0, %v1266
    %v1268 = vpop.f32.mrb[0].mxu0
    %1269 = vmatprep.mubr.f32.mxu0 0.0
    %1270 = vmatmul.mubr.f32.gmra.mrb[0].mxu0 %v763
    %v1271 = vpop.f32.mrb[0].mxu0
    %v1272 = vadd.f32 0.0, %v1271
    %v1273 = vpop.f32.mrb[0].mxu0
    %1274 = vmatprep.mubr.f32.mxu0 0.0
    %1275 = vmatmul.mubr.f32.gmra.mrb[0].mxu0 %v766
    %v1276 = vpop.f32.mrb[0].mxu0
    %v1277 = vadd.f32 0.0, %v1276
    %v1278 = vpop.f32.mrb[0].mxu0
    %1279 = vmatprep.mubr.f32.mxu0 0.0
    %1280 = vmatmul.mubr.f32.gmra.mrb[0].mxu0 %v769
    %v1281 = vpop.f32.mrb[0].mxu0
    %v1282 = vadd.f32 0.0, %v1281
    %v1283 = vpop.f32.mrb[0].mxu0
    %1284 = vmatprep.mubr.f32.mxu0 0.0
    %1285 = vmatmul.mubr.f32.gmra.mrb[0].mxu0 %v772
    %v1286 = vpop.f32.mrb[0].mxu0
    %v1287 = vadd.f32 0.0, %v1286
    %v1288 = vpop.f32.mrb[0].mxu0
    %1289 = vmatprep.mubr.f32.mxu0 0.0
    %1290 = vmatmul.mubr.f32.gmra.mrb[0].mxu0 %v775
    %v1291 = vpop.f32.mrb[0].mxu0
    %v1292 = vadd.f32 0.0, %v1291
    %v1293 = vpop.f32.mrb[0].mxu0
    %1294 = vmatprep.mubr.f32.mxu0 0.0
    %1295 = vmatmul.mubr.f32.gmra.mrb[0].mxu0 %v778
    %v1296 = vpop.f32.mrb[0].mxu0
    %v1297 = vadd.f32 0.0, %v1296
    %v1298 = vpop.f32.mrb[0].mxu0
    %1299 = vmatprep.mubr.f32.mxu0 0.0
    %1300 = vmatmul.mubr.f32.gmra.mrb[0].mxu0 %v781
    %v1301 = vpop.f32.mrb[0].mxu0
    %v1302 = vadd.f32 0.0, %v1301
    %v1303 = vpop.f32.mrb[0].mxu0
    %1304 = vmatprep.mubr.f32.mxu0 0.0
    %1305 = vmatmul.mubr.f32.gmra.mrb[0].mxu0 %v784
    %v1306 = vpop.f32.mrb[0].mxu0
    %v1307 = vadd.f32 0.0, %v1306
    %v1308 = vpop.f32.mrb[0].mxu0
    %1309 = vmatprep.mubr.f32.mxu0 0.0
    %1310 = vmatmul.mubr.f32.gmra.mrb[0].mxu0 %v787
    %v1311 = vpop.f32.mrb[0].mxu0
    %v1312 = vadd.f32 0.0, %v1311
    %v1313 = vpop.f32.mrb[0].mxu0
    %1314 = vmatprep.mubr.f32.mxu0 0.0
    %1315 = vmatmul.mubr.f32.gmra.mrb[0].mxu0 %v790
    %v1316 = vpop.f32.mrb[0].mxu0
    %v1317 = vadd.f32 0.0, %v1316
    %v1318 = vpop.f32.mrb[0].mxu0
    %1319 = vmatprep.mubr.f32.mxu0 0.0
    %1320 = vmatmul.mubr.f32.gmra.mrb[0].mxu0 %v793
    %v1321 = vpop.f32.mrb[0].mxu0
    %v1322 = vadd.f32 0.0, %v1321
    %v1323 = vpop.f32.mrb[0].mxu0
    %1324 = vmatprep.mubr.f32.mxu0 0.0
    %1325 = vmatmul.mubr.f32.gmra.mrb[0].mxu0 %v796
    %v1326 = vpop.f32.mrb[0].mxu0
    %v1327 = vadd.f32 0.0, %v1326
    %v1328 = vpop.f32.mrb[0].mxu0
    %1329 = vmatprep.mubr.f32.mxu0 0.0
    %1330 = vmatmul.mubr.f32.gmra.mrb[0].mxu0 %v799
    %v1331 = vpop.f32.mrb[0].mxu0
    %v1332 = vadd.f32 0.0, %v1331
    %v1333 = vpop.f32.mrb[0].mxu0
    %1334 = vmatprep.mubr.f32.mxu0 0.0
    %1335 = vmatmul.mubr.f32.gmra.mrb[0].mxu0 %v802
    %v1336 = vpop.f32.mrb[0].mxu0
    %v1337 = vadd.f32 0.0, %v1336
    %v1338 = vpop.f32.mrb[0].mxu0
    %1339 = vmatprep.mubr.f32.mxu0 0.0
    %1340 = vmatmul.mubr.f32.gmra.mrb[0].mxu0 %v805
    %v1341 = vpop.f32.mrb[0].mxu0
    %v1342 = vadd.f32 0.0, %v1341
    %v1343 = vpop.f32.mrb[0].mxu0
    %1344 = vmatprep.mubr.f32.mxu0 0.0
    %1345 = vmatmul.mubr.f32.gmra.mrb[0].mxu0 %v808
    %v1346 = vpop.f32.mrb[0].mxu0
    %v1347 = vadd.f32 0.0, %v1346
    %v1348 = vpop.f32.mrb[0].mxu0
    %1349 = vmatprep.mubr.f32.mxu0 0.0
    %1350 = vmatmul.mubr.f32.gmra.mrb[0].mxu0 %v811
    %v1351 = vpop.f32.mrb[0].mxu0
    %v1352 = vadd.f32 0.0, %v1351
    %v1353 = vpop.f32.mrb[0].mxu0
    %1354 = vmatprep.mubr.f32.mxu0 0.0
    %1355 = vmatmul.mubr.f32.gmra.mrb[0].mxu0 %v814
    %v1356 = vpop.f32.mrb[0].mxu0
    %v1357 = vadd.f32 0.0, %v1356
    %v1358 = vpop.f32.mrb[0].mxu0
    %1359 = vmatprep.mubr.f32.mxu0 0.0
    %1360 = vmatmul.mubr.f32.gmra.mrb[0].mxu0 %v817
    %v1361 = vpop.f32.mrb[0].mxu0
    %v1362 = vadd.f32 0.0, %v1361
    %v1363 = vpop.f32.mrb[0].mxu0
    %1364 = vmatprep.mubr.f32.mxu0 0.0
    %1365 = vmatmul.mubr.f32.gmra.mrb[0].mxu0 %v820
    %v1366 = vpop.f32.mrb[0].mxu0
    %v1367 = vadd.f32 0.0, %v1366
    %v1368 = vpop.f32.mrb[0].mxu0
    %1369 = vmatprep.mubr.f32.mxu0 0.0
    %1370 = vmatmul.mubr.f32.gmra.mrb[0].mxu0 %v823
    %v1371 = vpop.f32.mrb[0].mxu0
    %v1372 = vadd.f32 0.0, %v1371
    %v1373 = vpop.f32.mrb[0].mxu0
    %1374 = vmatprep.mubr.f32.mxu0 0.0
    %1375 = vmatmul.mubr.f32.gmra.mrb[0].mxu0 %v826
    %v1376 = vpop.f32.mrb[0].mxu0
    %v1377 = vadd.f32 0.0, %v1376
    %v1378 = vpop.f32.mrb[0].mxu0
    %1379 = vmatprep.mubr.f32.mxu0 0.0
    %1380 = vmatmul.mubr.f32.gmra.mrb[0].mxu0 %v829
    %v1381 = vpop.f32.mrb[0].mxu0
    %v1382 = vadd.f32 0.0, %v1381
    %v1383 = vpop.f32.mrb[0].mxu0
    %1384 = vmatprep.mubr.f32.mxu0 0.0
    %1385 = vmatmul.mubr.f32.gmra.mrb[0].mxu0 %v832
    %v1386 = vpop.f32.mrb[0].mxu0
    %v1387 = vadd.f32 0.0, %v1386
    %v1388 = vpop.f32.mrb[0].mxu0
    %1389 = vmatprep.mubr.f32.mxu0 0.0
    %1390 = vmatmul.mubr.f32.gmra.mrb[0].mxu0 %v835
    %v1391 = vpop.f32.mrb[0].mxu0
    %v1392 = vadd.f32 0.0, %v1391
    %v1393 = vpop.f32.mrb[0].mxu0
    %1394 = vmatprep.mubr.f32.mxu0 0.0
    %1395 = vmatmul.mubr.f32.gmra.mrb[0].mxu0 %v838
    %v1396 = vpop.f32.mrb[0].mxu0
    %v1397 = vadd.f32 0.0, %v1396
    %v1398 = vpop.f32.mrb[0].mxu0
    %1399 = vmatprep.mubr.f32.mxu0 0.0
    %1400 = vmatmul.mubr.f32.gmra.mrb[0].mxu0 %v841
    %v1401 = vpop.f32.mrb[0].mxu0
    %v1402 = vadd.f32 0.0, %v1401
    %v1403 = vpop.f32.mrb[0].mxu0
    %1404 = vmatprep.mubr.f32.mxu0 0.0
    %1405 = vmatmul.mubr.f32.gmra.mrb[0].mxu0 %v844
    %v1406 = vpop.f32.mrb[0].mxu0
    %v1407 = vadd.f32 0.0, %v1406
    %v1408 = vpop.f32.mrb[0].mxu0
    %1409 = vmatprep.mubr.f32.mxu0 0.0
    %1410 = vmatmul.mubr.f32.gmra.mrb[0].mxu0 %v847
    %v1411 = vpop.f32.mrb[0].mxu0
    %v1412 = vadd.f32 0.0, %v1411
    %v1413 = vpop.f32.mrb[0].mxu0
    %1414 = vmatprep.mubr.f32.mxu0 0.0
    %1415 = vmatmul.mubr.f32.gmra.mrb[0].mxu0 %v850
    %v1416 = vpop.f32.mrb[0].mxu0
    %v1417 = vadd.f32 0.0, %v1416
    %v1418 = vpop.f32.mrb[0].mxu0
    %1419 = vmatprep.mubr.f32.mxu0 0.0
    %1420 = vmatmul.mubr.f32.gmra.mrb[0].mxu0 %v853
    %v1421 = vpop.f32.mrb[0].mxu0
    %v1422 = vadd.f32 0.0, %v1421
    %v1423 = vpop.f32.mrb[0].mxu0
    %1424 = vmatprep.mubr.f32.mxu0 0.0
    %1425 = vmatmul.mubr.f32.gmra.mrb[0].mxu0 %v856
    %v1426 = vpop.f32.mrb[0].mxu0
    %v1427 = vadd.f32 0.0, %v1426
    %v1428 = vpop.f32.mrb[0].mxu0
    %1429 = vmatprep.mubr.f32.mxu0 0.0
    %1430 = vmatmul.mubr.f32.gmra.mrb[0].mxu0 %v859
    %v1431 = vpop.f32.mrb[0].mxu0
    %v1432 = vadd.f32 0.0, %v1431
    %v1433 = vpop.f32.mrb[0].mxu0
    %1434 = vmatprep.mubr.f32.mxu0 0.0
    %1435 = vmatmul.mubr.f32.gmra.mrb[0].mxu0 %v862
    %v1436 = vpop.f32.mrb[0].mxu0
    %v1437 = vadd.f32 0.0, %v1436
    %v1438 = vpop.f32.mrb[0].mxu0
    %1439 = vmatprep.mubr.f32.mxu0 0.0
    %1440 = vmatmul.mubr.f32.gmra.mrb[0].mxu0 %v865
    %v1441 = vpop.f32.mrb[0].mxu0
    %v1442 = vadd.f32 0.0, %v1441
    %v1443 = vpop.f32.mrb[0].mxu0
    %1444 = vmatprep.mubr.f32.mxu0 0.0
    %1445 = vmatmul.mubr.f32.gmra.mrb[0].mxu0 %v868
    %v1446 = vpop.f32.mrb[0].mxu0
    %v1447 = vadd.f32 0.0, %v1446
    %v1448 = vpop.f32.mrb[0].mxu0
    %1449 = vmatprep.mubr.f32.mxu0 0.0
    %1450 = vmatmul.mubr.f32.gmra.mrb[0].mxu0 %v871
    %v1451 = vpop.f32.mrb[0].mxu0
    %v1452 = vadd.f32 0.0, %v1451
    %v1453 = vpop.f32.mrb[0].mxu0
    %1454 = vmatprep.mubr.f32.mxu0 0.0
    %1455 = vmatmul.mubr.f32.gmra.mrb[0].mxu0 %v874
    %v1456 = vpop.f32.mrb[0].mxu0
    %v1457 = vadd.f32 0.0, %v1456
    %v1458 = vpop.f32.mrb[0].mxu0
    %1459 = vmatprep.mubr.f32.mxu0 0.0
    %1460 = vmatmul.mubr.f32.gmra.mrb[0].mxu0 %v877
    %v1461 = vpop.f32.mrb[0].mxu0
    %v1462 = vadd.f32 0.0, %v1461
    %v1463 = vpop.f32.mrb[0].mxu0
    %1464 = vmatprep.mubr.f32.mxu0 0.0
    %1465 = vmatmul.mubr.f32.gmra.mrb[0].mxu0 %v880
    %v1466 = vpop.f32.mrb[0].mxu0
    %v1467 = vadd.f32 0.0, %v1466
    %v1468 = vpop.f32.mrb[0].mxu0
    %1469 = vmatprep.mubr.f32.mxu0 0.0
    %1470 = vmatmul.mubr.f32.gmra.mrb[0].mxu0 %v883
    %v1471 = vpop.f32.mrb[0].mxu0
    %v1472 = vadd.f32 0.0, %v1471
    %v1473 = vpop.f32.mrb[0].mxu0
    %1474 = vmatprep.mubr.f32.mxu0 0.0
    %1475 = vmatmul.mubr.f32.gmra.mrb[0].mxu0 %v886
    %v1476 = vpop.f32.mrb[0].mxu0
    %v1477 = vadd.f32 0.0, %v1476
    %v1478 = vpop.f32.mrb[0].mxu0
    %1479 = vmatprep.mubr.f32.mxu0 0.0
    %1480 = vmatmul.mubr.f32.gmra.mrb[0].mxu0 %v889
    %v1481 = vpop.f32.mrb[0].mxu0
    %v1482 = vadd.f32 0.0, %v1481
    %v1483 = vpop.f32.mrb[0].mxu0
    %1484 = vmatprep.mubr.f32.mxu0 0.0
    %1485 = vmatmul.mubr.f32.gmra.mrb[0].mxu0 %v892
    %v1486 = vpop.f32.mrb[0].mxu0
    %v1487 = vadd.f32 0.0, %v1486
    %v1488 = vpop.f32.mrb[0].mxu0
    %1489 = vmatprep.mubr.f32.mxu0 0.0
    %1490 = vmatmul.mubr.f32.gmra.mrb[0].mxu0 %v895
    %v1491 = vpop.f32.mrb[0].mxu0
    %v1492 = vadd.f32 0.0, %v1491
    %v1493 = vpop.f32.mrb[0].mxu0
    %1494 = vmatprep.mubr.f32.mxu0 0.0
    %1495 = vmatmul.mubr.f32.gmra.mrb[0].mxu0 %v898
    %v1496 = vpop.f32.mrb[0].mxu0
    %v1497 = vadd.f32 0.0, %v1496
    %v1498 = vpop.f32.mrb[0].mxu0
    %1499 = vmatprep.mubr.f32.mxu0 0.0
    %1500 = vmatmul.mubr.f32.gmra.mrb[0].mxu0 %v901
    %v1501 = vpop.f32.mrb[0].mxu0
    %v1502 = vadd.f32 0.0, %v1501
    %v1503 = vpop.f32.mrb[0].mxu0
    %1504 = vmatprep.mubr.f32.mxu0 0.0
    %1505 = vmatmul.mubr.f32.gmra.mrb[0].mxu0 %v904
    %v1506 = vpop.f32.mrb[0].mxu0
    %v1507 = vadd.f32 0.0, %v1506
    %v1508 = vpop.f32.mrb[0].mxu0
    %1509 = vmatprep.mubr.f32.mxu0 0.0
    %1510 = vmatmul.mubr.f32.gmra.mrb[0].mxu0 %v907
    %v1511 = vpop.f32.mrb[0].mxu0
    %v1512 = vadd.f32 0.0, %v1511
    %v1513 = vpop.f32.mrb[0].mxu0
    %1514 = vmatprep.mubr.f32.mxu0 0.0
    %1515 = vmatmul.mubr.f32.gmra.mrb[0].mxu0 %v910
    %v1516 = vpop.f32.mrb[0].mxu0
    %v1517 = vadd.f32 0.0, %v1516
    %v1518 = vpop.f32.mrb[0].mxu0
    %1519 = vmatprep.mubr.f32.mxu0 0.0
    %1520 = vmatmul.mubr.f32.gmra.mrb[0].mxu0 %v913
    %v1521 = vpop.f32.mrb[0].mxu0
    %v1522 = vadd.f32 0.0, %v1521
    %v1523 = vpop.f32.mrb[0].mxu0
    %1524 = vmatprep.mubr.f32.mxu0 0.0
    %1525 = vmatmul.mubr.f32.gmra.mrb[0].mxu0 %v916
    %v1526 = vpop.f32.mrb[0].mxu0
    %v1527 = vadd.f32 0.0, %v1526
    %v1528 = vpop.f32.mrb[0].mxu0
    %1529 = vmatprep.mubr.f32.mxu0 0.0
    %1530 = vmatmul.mubr.f32.gmra.mrb[0].mxu0 %v919
    %v1531 = vpop.f32.mrb[0].mxu0
    %v1532 = vadd.f32 0.0, %v1531
    %v1533 = vpop.f32.mrb[0].mxu0
    %1534 = vmatprep.mubr.f32.mxu0 0.0
    %1535 = vmatmul.mubr.f32.gmra.mrb[0].mxu0 %v922
    %v1536 = vpop.f32.mrb[0].mxu0
    %v1537 = vadd.f32 0.0, %v1536
    %v1538 = vpop.f32.mrb[0].mxu0
    %1539 = vmatprep.mubr.f32.mxu0 0.0
    %1540 = vmatmul.mubr.f32.gmra.mrb[0].mxu0 %v925
    %v1541 = vpop.f32.mrb[0].mxu0
    %v1542 = vadd.f32 0.0, %v1541
    %v1543 = vpop.f32.mrb[0].mxu0
    %1544 = vmatprep.mubr.f32.mxu0 0.0
    %1545 = vmatmul.mubr.f32.gmra.mrb[0].mxu0 %v928
    %v1546 = vpop.f32.mrb[0].mxu0
    %v1547 = vadd.f32 0.0, %v1546
    %v1548 = vpop.f32.mrb[0].mxu0
    %1549 = vmatprep.mubr.f32.mxu0 0.0
    %1550 = vmatmul.mubr.f32.gmra.mrb[0].mxu0 %v931
    %v1551 = vpop.f32.mrb[0].mxu0
    %v1552 = vadd.f32 0.0, %v1551
    %v1553 = vpop.f32.mrb[0].mxu0
    %1554 = vmatprep.mubr.f32.mxu0 0.0
    %1555 = vmatmul.mubr.f32.gmra.mrb[0].mxu0 %v934
    %v1556 = vpop.f32.mrb[0].mxu0
    %v1557 = vadd.f32 0.0, %v1556
    %v1558 = vpop.f32.mrb[0].mxu0
    %1559 = vmatprep.mubr.f32.mxu0 0.0
    %1560 = vmatmul.mubr.f32.gmra.mrb[0].mxu0 %v937
    %v1561 = vpop.f32.mrb[0].mxu0
    %v1562 = vadd.f32 0.0, %v1561
    %v1563 = vpop.f32.mrb[0].mxu0
    %1564 = vmatprep.mubr.f32.mxu0 0.0
    %1565 = vmatmul.mubr.f32.gmra.mrb[0].mxu0 %v940
    %v1566 = vpop.f32.mrb[0].mxu0
    %v1567 = vadd.f32 0.0, %v1566
    %v1568 = vpop.f32.mrb[0].mxu0
    %1569 = vmatprep.mubr.f32.mxu0 0.0
    %1570 = vmatmul.mubr.f32.gmra.mrb[0].mxu0 %v943
    %v1571 = vpop.f32.mrb[0].mxu0
    %v1572 = vadd.f32 0.0, %v1571
    %v1573 = vpop.f32.mrb[0].mxu0
    %1574 = vmatprep.mubr.f32.mxu0 0.0
    %1575 = vmatmul.mubr.f32.gmra.mrb[0].mxu0 %v946
    %v1576 = vpop.f32.mrb[0].mxu0
    %v1577 = vadd.f32 0.0, %v1576
    %v1578 = vpop.f32.mrb[0].mxu0
    %1579 = vmatprep.mubr.f32.mxu0 0.0
    %1580 = vmatmul.mubr.f32.gmra.mrb[0].mxu0 %v949
    %v1581 = vpop.f32.mrb[0].mxu0
    %v1582 = vadd.f32 0.0, %v1581
    %v1583 = vpop.f32.mrb[0].mxu0
    %1584 = vmatprep.mubr.f32.mxu0 0.0
    %1585 = vmatmul.mubr.f32.gmra.mrb[0].mxu0 %v952
    %v1586 = vpop.f32.mrb[0].mxu0
    %v1587 = vadd.f32 0.0, %v1586
    %v1588 = vpop.f32.mrb[0].mxu0
    %1589 = vmatprep.mubr.f32.mxu0 0.0
    %1590 = vmatmul.mubr.f32.gmra.mrb[0].mxu0 %v955
    %v1591 = vpop.f32.mrb[0].mxu0
    %v1592 = vadd.f32 0.0, %v1591
    %v1593 = vpop.f32.mrb[0].mxu0
    %1594 = vmatprep.mubr.f32.mxu0 0.0
    %1595 = vmatmul.mubr.f32.gmra.mrb[0].mxu0 %v958
    %v1596 = vpop.f32.mrb[0].mxu0
    %v1597 = vadd.f32 0.0, %v1596
    %v1598 = vpop.f32.mrb[0].mxu0
    %1599 = vmatprep.mubr.f32.mxu0 0.0
    %1600 = vmatmul.mubr.f32.gmra.mrb[0].mxu0 %v961
    %v1601 = vpop.f32.mrb[0].mxu0
    %v1602 = vadd.f32 0.0, %v1601
    %v1603 = vpop.f32.mrb[0].mxu0
    %1604 = vmatprep.mubr.f32.mxu0 0.0
    %1605 = vmatmul.mubr.f32.gmra.mrb[0].mxu0 %v964
    %v1606 = vpop.f32.mrb[0].mxu0
    %v1607 = vadd.f32 0.0, %v1606
    %v1608 = vpop.f32.mrb[0].mxu0
    %1609 = vmatprep.mubr.f32.mxu0 0.0
    %1610 = vmatmul.mubr.f32.gmra.mrb[0].mxu0 %v967
    %v1611 = vpop.f32.mrb[0].mxu0
    %v1612 = vadd.f32 0.0, %v1611
    %v1613 = vpop.f32.mrb[0].mxu0
    %1614 = vmatprep.mubr.f32.mxu0 0.0
    %1615 = vmatmul.mubr.f32.gmra.mrb[0].mxu0 %v970
    %v1616 = vpop.f32.mrb[0].mxu0
    %v1617 = vadd.f32 0.0, %v1616
    %v1618 = vpop.f32.mrb[0].mxu0
    %1619 = vmatprep.mubr.f32.mxu0 0.0
    %1620 = vmatmul.mubr.f32.gmra.mrb[0].mxu0 %v973
    %v1621 = vpop.f32.mrb[0].mxu0
    %v1622 = vadd.f32 0.0, %v1621
    %v1623 = vpop.f32.mrb[0].mxu0
    %1624 = vmatprep.mubr.f32.mxu0 0.0
    %1625 = vmatmul.mubr.f32.gmra.mrb[0].mxu0 %v976
    %v1626 = vpop.f32.mrb[0].mxu0
    %v1627 = vadd.f32 0.0, %v1626
    %v1628 = vpop.f32.mrb[0].mxu0
    %1629 = vmatprep.mubr.f32.mxu0 0.0
    %1630 = vmatmul.mubr.f32.gmra.mrb[0].mxu0 %v979
    %v1631 = vpop.f32.mrb[0].mxu0
    %v1632 = vadd.f32 0.0, %v1631
    %v1633 = vpop.f32.mrb[0].mxu0
    %1634 = vmatprep.mubr.f32.mxu0 0.0
    %1635 = vmatmul.mubr.f32.gmra.mrb[0].mxu0 %v982
    %v1636 = vpop.f32.mrb[0].mxu0
    %v1637 = vadd.f32 0.0, %v1636
    %v1638 = vpop.f32.mrb[0].mxu0
    %1639 = vmatprep.mubr.f32.mxu0 0.0
    %1640 = vmatmul.mubr.f32.gmra.mrb[0].mxu0 %v985
    %v1641 = vpop.f32.mrb[0].mxu0
    %v1642 = vadd.f32 0.0, %v1641
    %v1643 = vpop.f32.mrb[0].mxu0
    %1644 = vmatprep.mubr.f32.mxu0 0.0
    %1645 = vmatmul.mubr.f32.gmra.mrb[0].mxu0 %v988
    %v1646 = vpop.f32.mrb[0].mxu0
    %v1647 = vadd.f32 0.0, %v1646
    %v1648 = vpop.f32.mrb[0].mxu0
    %1649 = vmatprep.mubr.f32.mxu0 0.0
    %1650 = vmatmul.mubr.f32.gmra.mrb[0].mxu0 %v991
    %v1651 = vpop.f32.mrb[0].mxu0
    %v1652 = vadd.f32 0.0, %v1651
    %v1653 = vpop.f32.mrb[0].mxu0
    %1654 = vmatprep.mubr.f32.mxu0 0.0
    %1655 = vmatmul.mubr.f32.gmra.mrb[0].mxu0 %v994
    %v1656 = vpop.f32.mrb[0].mxu0
    %v1657 = vadd.f32 0.0, %v1656
    %v1658 = vpop.f32.mrb[0].mxu0
    %1659 = vmatprep.mubr.f32.mxu0 0.0
    %1660 = vmatmul.mubr.f32.gmra.mrb[0].mxu0 %v997
    %v1661 = vpop.f32.mrb[0].mxu0
    %v1662 = vadd.f32 0.0, %v1661
    %v1663 = vpop.f32.mrb[0].mxu0
    %1664 = vmatprep.mubr.f32.mxu0 0.0
    %1665 = vmatmul.mubr.f32.gmra.mrb[0].mxu0 %v1000
    %v1666 = vpop.f32.mrb[0].mxu0
    %v1667 = vadd.f32 0.0, %v1666
    %v1668 = vpop.f32.mrb[0].mxu0
    %1669 = vmatprep.mubr.f32.mxu0 0.0
    %1670 = vmatmul.mubr.f32.gmra.mrb[0].mxu0 %v1003
    %v1671 = vpop.f32.mrb[0].mxu0
    %v1672 = vadd.f32 0.0, %v1671
    %v1673 = vpop.f32.mrb[0].mxu0
    %1674 = vmatprep.mubr.f32.mxu0 0.0
    %1675 = vmatmul.mubr.f32.gmra.mrb[0].mxu0 %v1006
    %v1676 = vpop.f32.mrb[0].mxu0
    %v1677 = vadd.f32 0.0, %v1676
    %v1678 = vpop.f32.mrb[0].mxu0
    %1679 = vmatprep.mubr.f32.mxu0 0.0
    %1680 = vmatmul.mubr.f32.gmra.mrb[0].mxu0 %v1009
    %v1681 = vpop.f32.mrb[0].mxu0
    %v1682 = vadd.f32 0.0, %v1681
    %v1683 = vpop.f32.mrb[0].mxu0
    %1684 = vmatprep.mubr.f32.mxu0 0.0
    %1685 = vmatmul.mubr.f32.gmra.mrb[0].mxu0 %v1012
    %v1686 = vpop.f32.mrb[0].mxu0
    %v1687 = vadd.f32 0.0, %v1686
    %v1688 = vpop.f32.mrb[0].mxu0
    %1689 = vmatprep.mubr.f32.mxu0 0.0
    %1690 = vmatmul.mubr.f32.gmra.mrb[0].mxu0 %v1015
    %v1691 = vpop.f32.mrb[0].mxu0
    %v1692 = vadd.f32 0.0, %v1691
    %v1693 = vpop.f32.mrb[0].mxu0
    %1694 = vmatprep.mubr.f32.mxu0 0.0
    %1695 = vmatmul.mubr.f32.gmra.mrb[0].mxu0 %v1018
    %v1696 = vpop.f32.mrb[0].mxu0
    %v1697 = vadd.f32 0.0, %v1696
    %v1698 = vpop.f32.mrb[0].mxu0
    %1699 = vmatprep.mubr.f32.mxu0 0.0
    %1700 = vmatmul.mubr.f32.gmra.mrb[0].mxu0 %v1021
    %v1701 = vpop.f32.mrb[0].mxu0
    %v1702 = vadd.f32 0.0, %v1701
    %v1703 = vpop.f32.mrb[0].mxu0
    %1704 = vmatprep.mubr.f32.mxu0 0.0
    %1705 = vmatmul.mubr.f32.gmra.mrb[0].mxu0 %v1024
    %v1706 = vpop.f32.mrb[0].mxu0
    %v1707 = vadd.f32 0.0, %v1706
    %v1708 = vpop.f32.mrb[0].mxu0
    %1709 = vmatprep.mubr.f32.mxu0 0.0
    %1710 = vmatmul.mubr.f32.gmra.mrb[0].mxu0 %v1027
    %v1711 = vpop.f32.mrb[0].mxu0
    %v1712 = vadd.f32 0.0, %v1711
    %v1713 = vpop.f32.mrb[0].mxu0
    %1714 = vmatprep.mubr.f32.mxu0 0.0
    %1715 = vmatmul.mubr.f32.gmra.mrb[0].mxu0 %v1030
    %v1716 = vpop.f32.mrb[0].mxu0
    %v1717 = vadd.f32 0.0, %v1716
    %v1718 = vpop.f32.mrb[0].mxu0
    %1719 = vmatprep.mubr.f32.mxu0 0.0
    %1720 = vmatmul.mubr.f32.gmra.mrb[0].mxu0 %v1033
    %v1721 = vpop.f32.mrb[0].mxu0
    %v1722 = vadd.f32 0.0, %v1721
    %v1723 = vpop.f32.mrb[0].mxu0
    %1724 = vmatprep.mubr.f32.mxu0 0.0
    %1725 = vmatmul.mubr.f32.gmra.mrb[0].mxu0 %v1036
    %v1726 = vpop.f32.mrb[0].mxu0
    %v1727 = vadd.f32 0.0, %v1726
    %v1728 = vpop.f32.mrb[0].mxu0
    %1729 = vmatprep.mubr.f32.mxu0 0.0
    %1730 = vmatmul.mubr.f32.gmra.mrb[0].mxu0 %v1039
    %v1731 = vpop.f32.mrb[0].mxu0
    %v1732 = vadd.f32 0.0, %v1731
    %v1733 = vpop.f32.mrb[0].mxu0
    %1734 = vmatprep.mubr.f32.mxu0 0.0
    %1735 = vmatmul.mubr.f32.gmra.mrb[0].mxu0 %v1042
    %v1736 = vpop.f32.mrb[0].mxu0
    %v1737 = vadd.f32 0.0, %v1736
    %v1738 = vpop.f32.mrb[0].mxu0
    %1739 = vmatprep.mubr.f32.mxu0 0.0
    %1740 = vmatmul.mubr.f32.gmra.mrb[0].mxu0 %v1045
    %v1741 = vpop.f32.mrb[0].mxu0
    %v1742 = vadd.f32 0.0, %v1741
    %v1743 = vpop.f32.mrb[0].mxu0
    %1744 = vmatprep.mubr.f32.mxu0 0.0
    %1745 = vmatmul.mubr.f32.gmra.mrb[0].mxu0 %v1048
    %v1746 = vpop.f32.mrb[0].mxu0
    %v1747 = vadd.f32 0.0, %v1746
    %v1748 = vpop.f32.mrb[0].mxu0
    %1749 = vmatprep.mubr.f32.mxu0 0.0
    %1750 = vmatmul.mubr.f32.gmra.mrb[0].mxu0 %v1051
    %v1751 = vpop.f32.mrb[0].mxu0
    %v1752 = vadd.f32 0.0, %v1751
    %v1753 = vpop.f32.mrb[0].mxu0
    %1754 = vmatprep.mubr.f32.mxu0 0.0
    %1755 = vmatmul.mubr.f32.gmra.mrb[0].mxu0 %v1054
    %v1756 = vpop.f32.mrb[0].mxu0
    %v1757 = vadd.f32 0.0, %v1756
    %v1758 = vpop.f32.mrb[0].mxu0
    %1759 = vmatprep.mubr.f32.mxu0 0.0
    %1760 = vmatmul.mubr.f32.gmra.mrb[0].mxu0 %v1057
    %v1761 = vpop.f32.mrb[0].mxu0
    %v1762 = vadd.f32 0.0, %v1761
    %v1763 = vpop.f32.mrb[0].mxu0
    %1764 = vmatprep.mubr.f32.mxu0 0.0
    %1765 = vmatmul.mubr.f32.gmra.mrb[0].mxu0 %v1060
    %v1766 = vpop.f32.mrb[0].mxu0
    %v1767 = vadd.f32 0.0, %v1766
    %v1768 = vpop.f32.mrb[0].mxu0
    %1769 = vdwg.mxu0
    %v1770 = vadd.f32 %v249, %v1132
    %v1771 = vadd.f32 %v250, %v1137
    %v1772 = vadd.f32 %v251, %v1142
    %v1773 = vadd.f32 %v252, %v1147
    %v1774 = vadd.f32 %v253, %v1152
    %v1775 = vadd.f32 %v254, %v1157
    %v1776 = vadd.f32 %v255, %v1162
    %v1777 = vadd.f32 %v256, %v1167
    %v1778 = vadd.f32 %v257, %v1172
    %v1779 = vadd.f32 %v258, %v1177
    %v1780 = vadd.f32 %v259, %v1182
    %v1781 = vadd.f32 %v260, %v1187
    %v1782 = vadd.f32 %v261, %v1192
    %v1783 = vadd.f32 %v262, %v1197
    %v1784 = vadd.f32 %v263, %v1202
    %v1785 = vadd.f32 %v264, %v1207
    %v1786 = vadd.f32 %v265, %v1212
    %v1787 = vadd.f32 %v266, %v1217
    %v1788 = vadd.f32 %v267, %v1222
    %v1789 = vadd.f32 %v268, %v1227
    %v1790 = vadd.f32 %v269, %v1232
    %v1791 = vadd.f32 %v270, %v1237
    %v1792 = vadd.f32 %v271, %v1242
    %v1793 = vadd.f32 %v272, %v1247
    %v1794 = vadd.f32 %v273, %v1252
    %v1795 = vadd.f32 %v274, %v1257
    %v1796 = vadd.f32 %v275, %v1262
    %v1797 = vadd.f32 %v276, %v1267
    %v1798 = vadd.f32 %v277, %v1272
    %v1799 = vadd.f32 %v278, %v1277
    %v1800 = vadd.f32 %v279, %v1282
    %v1801 = vadd.f32 %v280, %v1287
    %v1802 = vadd.f32 %v281, %v1292
    %v1803 = vadd.f32 %v282, %v1297
    %v1804 = vadd.f32 %v283, %v1302
    %v1805 = vadd.f32 %v284, %v1307
    %v1806 = vadd.f32 %v285, %v1312
    %v1807 = vadd.f32 %v286, %v1317
    %v1808 = vadd.f32 %v287, %v1322
    %v1809 = vadd.f32 %v288, %v1327
    %v1810 = vadd.f32 %v289, %v1332
    %v1811 = vadd.f32 %v290, %v1337
    %v1812 = vadd.f32 %v291, %v1342
    %v1813 = vadd.f32 %v292, %v1347
    %v1814 = vadd.f32 %v293, %v1352
    %v1815 = vadd.f32 %v294, %v1357
    %v1816 = vadd.f32 %v295, %v1362
    %v1817 = vadd.f32 %v296, %v1367
    %v1818 = vadd.f32 %v297, %v1372
    %v1819 = vadd.f32 %v298, %v1377
    %v1820 = vadd.f32 %v299, %v1382
    %v1821 = vadd.f32 %v300, %v1387
    %v1822 = vadd.f32 %v301, %v1392
    %v1823 = vadd.f32 %v302, %v1397
    %v1824 = vadd.f32 %v303, %v1402
    %v1825 = vadd.f32 %v304, %v1407
    %v1826 = vadd.f32 %v305, %v1412
    %v1827 = vadd.f32 %v306, %v1417
    %v1828 = vadd.f32 %v307, %v1422
    %v1829 = vadd.f32 %v308, %v1427
    %v1830 = vadd.f32 %v309, %v1432
    %v1831 = vadd.f32 %v310, %v1437
    %v1832 = vadd.f32 %v311, %v1442
    %v1833 = vadd.f32 %v312, %v1447
    %v1834 = vadd.f32 %v313, %v1452
    %v1835 = vadd.f32 %v314, %v1457
    %v1836 = vadd.f32 %v315, %v1462
    %v1837 = vadd.f32 %v316, %v1467
    %v1838 = vadd.f32 %v317, %v1472
    %v1839 = vadd.f32 %v318, %v1477
    %v1840 = vadd.f32 %v319, %v1482
    %v1841 = vadd.f32 %v320, %v1487
    %v1842 = vadd.f32 %v321, %v1492
    %v1843 = vadd.f32 %v322, %v1497
    %v1844 = vadd.f32 %v323, %v1502
    %v1845 = vadd.f32 %v324, %v1507
    %v1846 = vadd.f32 %v325, %v1512
    %v1847 = vadd.f32 %v326, %v1517
    %v1848 = vadd.f32 %v327, %v1522
    %v1849 = vadd.f32 %v328, %v1527
    %v1850 = vadd.f32 %v329, %v1532
    %v1851 = vadd.f32 %v330, %v1537
    %v1852 = vadd.f32 %v331, %v1542
    %v1853 = vadd.f32 %v332, %v1547
    %v1854 = vadd.f32 %v333, %v1552
    %v1855 = vadd.f32 %v334, %v1557
    %v1856 = vadd.f32 %v335, %v1562
    %v1857 = vadd.f32 %v336, %v1567
    %v1858 = vadd.f32 %v337, %v1572
    %v1859 = vadd.f32 %v338, %v1577
    %v1860 = vadd.f32 %v339, %v1582
    %v1861 = vadd.f32 %v340, %v1587
    %v1862 = vadd.f32 %v341, %v1592
    %v1863 = vadd.f32 %v342, %v1597
    %v1864 = vadd.f32 %v343, %v1602
    %v1865 = vadd.f32 %v344, %v1607
    %v1866 = vadd.f32 %v345, %v1612
    %v1867 = vadd.f32 %v346, %v1617
    %v1868 = vadd.f32 %v347, %v1622
    %v1869 = vadd.f32 %v348, %v1627
    %v1870 = vadd.f32 %v349, %v1632
    %v1871 = vadd.f32 %v350, %v1637
    %v1872 = vadd.f32 %v351, %v1642
    %v1873 = vadd.f32 %v352, %v1647
    %v1874 = vadd.f32 %v353, %v1652
    %v1875 = vadd.f32 %v354, %v1657
    %v1876 = vadd.f32 %v355, %v1662
    %v1877 = vadd.f32 %v356, %v1667
    %v1878 = vadd.f32 %v357, %v1672
    %v1879 = vadd.f32 %v358, %v1677
    %v1880 = vadd.f32 %v359, %v1682
    %v1881 = vadd.f32 %v360, %v1687
    %v1882 = vadd.f32 %v361, %v1692
    %v1883 = vadd.f32 %v362, %v1697
    %v1884 = vadd.f32 %v363, %v1702
    %v1885 = vadd.f32 %v364, %v1707
    %v1886 = vadd.f32 %v365, %v1712
    %v1887 = vadd.f32 %v366, %v1717
    %v1888 = vadd.f32 %v367, %v1722
    %v1889 = vadd.f32 %v368, %v1727
    %v1890 = vadd.f32 %v369, %v1732
    %v1891 = vadd.f32 %v370, %v1737
    %v1892 = vadd.f32 %v371, %v1742
    %v1893 = vadd.f32 %v372, %v1747
    %v1894 = vadd.f32 %v373, %v1752
    %v1895 = vadd.f32 %v374, %v1757
    %v1896 = vadd.f32 %v375, %v1762
    %v1897 = vadd.f32 %v376, %v1767
    %vm1898 = vcmask 523264
    %1899 = vst.msk [vmem:[#allocation2] sm:$0xff] %vm1898, %v1770
    %1900 = vst.msk [vmem:[#allocation2 + $0x8] sm:$0xff] %vm1898, %v1771
    %1901 = vst.msk [vmem:[#allocation2 + $0x10] sm:$0xff] %vm1898, %v1772
    %1902 = vst.msk [vmem:[#allocation2 + $0x18] sm:$0xff] %vm1898, %v1773
    %1903 = vst.msk [vmem:[#allocation2 + $0x20] sm:$0xff] %vm1898, %v1774
    %1904 = vst.msk [vmem:[#allocation2 + $0x28] sm:$0xff] %vm1898, %v1775
    %1905 = vst.msk [vmem:[#allocation2 + $0x30] sm:$0xff] %vm1898, %v1776
    %1906 = vst.msk [vmem:[#allocation2 + $0x38] sm:$0xff] %vm1898, %v1777
    %1907 = vst.msk [vmem:[#allocation2 + $0x40] sm:$0xff] %vm1898, %v1778
    %1908 = vst.msk [vmem:[#allocation2 + $0x48] sm:$0xff] %vm1898, %v1779
    %1909 = vst.msk [vmem:[#allocation2 + $0x50] sm:$0xff] %vm1898, %v1780
    %1910 = vst.msk [vmem:[#allocation2 + $0x58] sm:$0xff] %vm1898, %v1781
    %1911 = vst.msk [vmem:[#allocation2 + $0x60] sm:$0xff] %vm1898, %v1782
    %1912 = vst.msk [vmem:[#allocation2 + $0x68] sm:$0xff] %vm1898, %v1783
    %1913 = vst.msk [vmem:[#allocation2 + $0x70] sm:$0xff] %vm1898, %v1784
    %1914 = vst.msk [vmem:[#allocation2 + $0x78] sm:$0xff] %vm1898, %v1785
    %1915 = vst.msk [vmem:[#allocation2 + $0x80] sm:$0xff] %vm1898, %v1786
    %1916 = vst.msk [vmem:[#allocation2 + $0x88] sm:$0xff] %vm1898, %v1787
    %1917 = vst.msk [vmem:[#allocation2 + $0x90] sm:$0xff] %vm1898, %v1788
    %1918 = vst.msk [vmem:[#allocation2 + $0x98] sm:$0xff] %vm1898, %v1789
    %1919 = vst.msk [vmem:[#allocation2 + $0xa0] sm:$0xff] %vm1898, %v1790
    %1920 = vst.msk [vmem:[#allocation2 + $0xa8] sm:$0xff] %vm1898, %v1791
    %1921 = vst.msk [vmem:[#allocation2 + $0xb0] sm:$0xff] %vm1898, %v1792
    %1922 = vst.msk [vmem:[#allocation2 + $0xb8] sm:$0xff] %vm1898, %v1793
    %1923 = vst.msk [vmem:[#allocation2 + $0xc0] sm:$0xff] %vm1898, %v1794
    %1924 = vst.msk [vmem:[#allocation2 + $0xc8] sm:$0xff] %vm1898, %v1795
    %1925 = vst.msk [vmem:[#allocation2 + $0xd0] sm:$0xff] %vm1898, %v1796
    %1926 = vst.msk [vmem:[#allocation2 + $0xd8] sm:$0xff] %vm1898, %v1797
    %1927 = vst.msk [vmem:[#allocation2 + $0xe0] sm:$0xff] %vm1898, %v1798
    %1928 = vst.msk [vmem:[#allocation2 + $0xe8] sm:$0xff] %vm1898, %v1799
    %1929 = vst.msk [vmem:[#allocation2 + $0xf0] sm:$0xff] %vm1898, %v1800
    %1930 = vst.msk [vmem:[#allocation2 + $0xf8] sm:$0xff] %vm1898, %v1801
    %1931 = vst.msk [vmem:[#allocation2 + $0x100] sm:$0xff] %vm1898, %v1802
    %1932 = vst.msk [vmem:[#allocation2 + $0x108] sm:$0xff] %vm1898, %v1803
    %1933 = vst.msk [vmem:[#allocation2 + $0x110] sm:$0xff] %vm1898, %v1804
    %1934 = vst.msk [vmem:[#allocation2 + $0x118] sm:$0xff] %vm1898, %v1805
    %1935 = vst.msk [vmem:[#allocation2 + $0x120] sm:$0xff] %vm1898, %v1806
    %1936 = vst.msk [vmem:[#allocation2 + $0x128] sm:$0xff] %vm1898, %v1807
    %1937 = vst.msk [vmem:[#allocation2 + $0x130] sm:$0xff] %vm1898, %v1808
    %1938 = vst.msk [vmem:[#allocation2 + $0x138] sm:$0xff] %vm1898, %v1809
    %1939 = vst.msk [vmem:[#allocation2 + $0x140] sm:$0xff] %vm1898, %v1810
    %1940 = vst.msk [vmem:[#allocation2 + $0x148] sm:$0xff] %vm1898, %v1811
    %1941 = vst.msk [vmem:[#allocation2 + $0x150] sm:$0xff] %vm1898, %v1812
    %1942 = vst.msk [vmem:[#allocation2 + $0x158] sm:$0xff] %vm1898, %v1813
    %1943 = vst.msk [vmem:[#allocation2 + $0x160] sm:$0xff] %vm1898, %v1814
    %1944 = vst.msk [vmem:[#allocation2 + $0x168] sm:$0xff] %vm1898, %v1815
    %1945 = vst.msk [vmem:[#allocation2 + $0x170] sm:$0xff] %vm1898, %v1816
    %1946 = vst.msk [vmem:[#allocation2 + $0x178] sm:$0xff] %vm1898, %v1817
    %1947 = vst.msk [vmem:[#allocation2 + $0x180] sm:$0xff] %vm1898, %v1818
    %1948 = vst.msk [vmem:[#allocation2 + $0x188] sm:$0xff] %vm1898, %v1819
    %1949 = vst.msk [vmem:[#allocation2 + $0x190] sm:$0xff] %vm1898, %v1820
    %1950 = vst.msk [vmem:[#allocation2 + $0x198] sm:$0xff] %vm1898, %v1821
    %1951 = vst.msk [vmem:[#allocation2 + $0x1a0] sm:$0xff] %vm1898, %v1822
    %1952 = vst.msk [vmem:[#allocation2 + $0x1a8] sm:$0xff] %vm1898, %v1823
    %1953 = vst.msk [vmem:[#allocation2 + $0x1b0] sm:$0xff] %vm1898, %v1824
    %1954 = vst.msk [vmem:[#allocation2 + $0x1b8] sm:$0xff] %vm1898, %v1825
    %1955 = vst.msk [vmem:[#allocation2 + $0x1c0] sm:$0xff] %vm1898, %v1826
    %1956 = vst.msk [vmem:[#allocation2 + $0x1c8] sm:$0xff] %vm1898, %v1827
    %1957 = vst.msk [vmem:[#allocation2 + $0x1d0] sm:$0xff] %vm1898, %v1828
    %1958 = vst.msk [vmem:[#allocation2 + $0x1d8] sm:$0xff] %vm1898, %v1829
    %1959 = vst.msk [vmem:[#allocation2 + $0x1e0] sm:$0xff] %vm1898, %v1830
    %1960 = vst.msk [vmem:[#allocation2 + $0x1e8] sm:$0xff] %vm1898, %v1831
    %1961 = vst.msk [vmem:[#allocation2 + $0x1f0] sm:$0xff] %vm1898, %v1832
    %1962 = vst.msk [vmem:[#allocation2 + $0x1f8] sm:$0xff] %vm1898, %v1833
    %1963 = vst.msk [vmem:[#allocation2 + $0x200] sm:$0xff] %vm1898, %v1834
    %1964 = vst.msk [vmem:[#allocation2 + $0x208] sm:$0xff] %vm1898, %v1835
    %1965 = vst.msk [vmem:[#allocation2 + $0x210] sm:$0xff] %vm1898, %v1836
    %1966 = vst.msk [vmem:[#allocation2 + $0x218] sm:$0xff] %vm1898, %v1837
    %1967 = vst.msk [vmem:[#allocation2 + $0x220] sm:$0xff] %vm1898, %v1838
    %1968 = vst.msk [vmem:[#allocation2 + $0x228] sm:$0xff] %vm1898, %v1839
    %1969 = vst.msk [vmem:[#allocation2 + $0x230] sm:$0xff] %vm1898, %v1840
    %1970 = vst.msk [vmem:[#allocation2 + $0x238] sm:$0xff] %vm1898, %v1841
    %1971 = vst.msk [vmem:[#allocation2 + $0x240] sm:$0xff] %vm1898, %v1842
    %1972 = vst.msk [vmem:[#allocation2 + $0x248] sm:$0xff] %vm1898, %v1843
    %1973 = vst.msk [vmem:[#allocation2 + $0x250] sm:$0xff] %vm1898, %v1844
    %1974 = vst.msk [vmem:[#allocation2 + $0x258] sm:$0xff] %vm1898, %v1845
    %1975 = vst.msk [vmem:[#allocation2 + $0x260] sm:$0xff] %vm1898, %v1846
    %1976 = vst.msk [vmem:[#allocation2 + $0x268] sm:$0xff] %vm1898, %v1847
    %1977 = vst.msk [vmem:[#allocation2 + $0x270] sm:$0xff] %vm1898, %v1848
    %1978 = vst.msk [vmem:[#allocation2 + $0x278] sm:$0xff] %vm1898, %v1849
    %1979 = vst.msk [vmem:[#allocation2 + $0x280] sm:$0xff] %vm1898, %v1850
    %1980 = vst.msk [vmem:[#allocation2 + $0x288] sm:$0xff] %vm1898, %v1851
    %1981 = vst.msk [vmem:[#allocation2 + $0x290] sm:$0xff] %vm1898, %v1852
    %1982 = vst.msk [vmem:[#allocation2 + $0x298] sm:$0xff] %vm1898, %v1853
    %1983 = vst.msk [vmem:[#allocation2 + $0x2a0] sm:$0xff] %vm1898, %v1854
    %1984 = vst.msk [vmem:[#allocation2 + $0x2a8] sm:$0xff] %vm1898, %v1855
    %1985 = vst.msk [vmem:[#allocation2 + $0x2b0] sm:$0xff] %vm1898, %v1856
    %1986 = vst.msk [vmem:[#allocation2 + $0x2b8] sm:$0xff] %vm1898, %v1857
    %1987 = vst.msk [vmem:[#allocation2 + $0x2c0] sm:$0xff] %vm1898, %v1858
    %1988 = vst.msk [vmem:[#allocation2 + $0x2c8] sm:$0xff] %vm1898, %v1859
    %1989 = vst.msk [vmem:[#allocation2 + $0x2d0] sm:$0xff] %vm1898, %v1860
    %1990 = vst.msk [vmem:[#allocation2 + $0x2d8] sm:$0xff] %vm1898, %v1861
    %1991 = vst.msk [vmem:[#allocation2 + $0x2e0] sm:$0xff] %vm1898, %v1862
    %1992 = vst.msk [vmem:[#allocation2 + $0x2e8] sm:$0xff] %vm1898, %v1863
    %1993 = vst.msk [vmem:[#allocation2 + $0x2f0] sm:$0xff] %vm1898, %v1864
    %1994 = vst.msk [vmem:[#allocation2 + $0x2f8] sm:$0xff] %vm1898, %v1865
    %1995 = vst.msk [vmem:[#allocation2 + $0x300] sm:$0xff] %vm1898, %v1866
    %1996 = vst.msk [vmem:[#allocation2 + $0x308] sm:$0xff] %vm1898, %v1867
    %1997 = vst.msk [vmem:[#allocation2 + $0x310] sm:$0xff] %vm1898, %v1868
    %1998 = vst.msk [vmem:[#allocation2 + $0x318] sm:$0xff] %vm1898, %v1869
    %1999 = vst.msk [vmem:[#allocation2 + $0x320] sm:$0xff] %vm1898, %v1870
    %2000 = vst.msk [vmem:[#allocation2 + $0x328] sm:$0xff] %vm1898, %v1871
    %2001 = vst.msk [vmem:[#allocation2 + $0x330] sm:$0xff] %vm1898, %v1872
    %2002 = vst.msk [vmem:[#allocation2 + $0x338] sm:$0xff] %vm1898, %v1873
    %2003 = vst.msk [vmem:[#allocation2 + $0x340] sm:$0xff] %vm1898, %v1874
    %2004 = vst.msk [vmem:[#allocation2 + $0x348] sm:$0xff] %vm1898, %v1875
    %2005 = vst.msk [vmem:[#allocation2 + $0x350] sm:$0xff] %vm1898, %v1876
    %2006 = vst.msk [vmem:[#allocation2 + $0x358] sm:$0xff] %vm1898, %v1877
    %2007 = vst.msk [vmem:[#allocation2 + $0x360] sm:$0xff] %vm1898, %v1878
    %2008 = vst.msk [vmem:[#allocation2 + $0x368] sm:$0xff] %vm1898, %v1879
    %2009 = vst.msk [vmem:[#allocation2 + $0x370] sm:$0xff] %vm1898, %v1880
    %2010 = vst.msk [vmem:[#allocation2 + $0x378] sm:$0xff] %vm1898, %v1881
    %2011 = vst.msk [vmem:[#allocation2 + $0x380] sm:$0xff] %vm1898, %v1882
    %2012 = vst.msk [vmem:[#allocation2 + $0x388] sm:$0xff] %vm1898, %v1883
    %2013 = vst.msk [vmem:[#allocation2 + $0x390] sm:$0xff] %vm1898, %v1884
    %2014 = vst.msk [vmem:[#allocation2 + $0x398] sm:$0xff] %vm1898, %v1885
    %2015 = vst.msk [vmem:[#allocation2 + $0x3a0] sm:$0xff] %vm1898, %v1886
    %2016 = vst.msk [vmem:[#allocation2 + $0x3a8] sm:$0xff] %vm1898, %v1887
    %2017 = vst.msk [vmem:[#allocation2 + $0x3b0] sm:$0xff] %vm1898, %v1888
    %2018 = vst.msk [vmem:[#allocation2 + $0x3b8] sm:$0xff] %vm1898, %v1889
    %2019 = vst.msk [vmem:[#allocation2 + $0x3c0] sm:$0xff] %vm1898, %v1890
    %2020 = vst.msk [vmem:[#allocation2 + $0x3c8] sm:$0xff] %vm1898, %v1891
    %2021 = vst.msk [vmem:[#allocation2 + $0x3d0] sm:$0xff] %vm1898, %v1892
    %2022 = vst.msk [vmem:[#allocation2 + $0x3d8] sm:$0xff] %vm1898, %v1893
    %2023 = vst.msk [vmem:[#allocation2 + $0x3e0] sm:$0xff] %vm1898, %v1894
    %2024 = vst.msk [vmem:[#allocation2 + $0x3e8] sm:$0xff] %vm1898, %v1895
    %2025 = vst.msk [vmem:[#allocation2 + $0x3f0] sm:$0xff] %vm1898, %v1896
    %2026 = vst.msk [vmem:[#allocation2 + $0x3f8] sm:$0xff] %vm1898, %v1897
    // Predicated region
    $region14: #{diff_loss.1} parent=1 // pred_check
      %p2027 = pneg %p12
    $region15: #{diff_loss.1} parent=1 // pred_check_branch
      %2029 = sbr.rel (%p2027) target = $region17
    $region16: #{diff_loss.1} parent=1 // pred_region
      %v2030 = vld [vmem:[#allocation2] sm:$0xff]
      %v2031 = vld [vmem:[#allocation2 + $0x8] sm:$0xff]
      %v2032 = vld [vmem:[#allocation2 + $0x10] sm:$0xff]
      %v2033 = vld [vmem:[#allocation2 + $0x18] sm:$0xff]
      %v2034 = vld [vmem:[#allocation2 + $0x20] sm:$0xff]
      %v2035 = vld [vmem:[#allocation2 + $0x28] sm:$0xff]
      %v2036 = vld [vmem:[#allocation2 + $0x30] sm:$0xff]
      %v2037 = vld [vmem:[#allocation2 + $0x38] sm:$0xff]
      %v2038 = vld [vmem:[#allocation2 + $0x40] sm:$0xff]
      %v2039 = vld [vmem:[#allocation2 + $0x48] sm:$0xff]
      %v2040 = vld [vmem:[#allocation2 + $0x50] sm:$0xff]
      %v2041 = vld [vmem:[#allocation2 + $0x58] sm:$0xff]
      %v2042 = vld [vmem:[#allocation2 + $0x60] sm:$0xff]
      %v2043 = vld [vmem:[#allocation2 + $0x68] sm:$0xff]
      %v2044 = vld [vmem:[#allocation2 + $0x70] sm:$0xff]
      %v2045 = vld [vmem:[#allocation2 + $0x78] sm:$0xff]
      %v2046 = vld [vmem:[#allocation2 + $0x80] sm:$0xff]
      %v2047 = vld [vmem:[#allocation2 + $0x88] sm:$0xff]
      %v2048 = vld [vmem:[#allocation2 + $0x90] sm:$0xff]
      %v2049 = vld [vmem:[#allocation2 + $0x98] sm:$0xff]
      %v2050 = vld [vmem:[#allocation2 + $0xa0] sm:$0xff]
      %v2051 = vld [vmem:[#allocation2 + $0xa8] sm:$0xff]
      %v2052 = vld [vmem:[#allocation2 + $0xb0] sm:$0xff]
      %v2053 = vld [vmem:[#allocation2 + $0xb8] sm:$0xff]
      %v2054 = vld [vmem:[#allocation2 + $0xc0] sm:$0xff]
      %v2055 = vld [vmem:[#allocation2 + $0xc8] sm:$0xff]
      %v2056 = vld [vmem:[#allocation2 + $0xd0] sm:$0xff]
      %v2057 = vld [vmem:[#allocation2 + $0xd8] sm:$0xff]
      %v2058 = vld [vmem:[#allocation2 + $0xe0] sm:$0xff]
      %v2059 = vld [vmem:[#allocation2 + $0xe8] sm:$0xff]
      %v2060 = vld [vmem:[#allocation2 + $0xf0] sm:$0xff]
      %v2061 = vld [vmem:[#allocation2 + $0xf8] sm:$0xff]
      %v2062 = vld [vmem:[#allocation2 + $0x100] sm:$0xff]
      %v2063 = vld [vmem:[#allocation2 + $0x108] sm:$0xff]
      %v2064 = vld [vmem:[#allocation2 + $0x110] sm:$0xff]
      %v2065 = vld [vmem:[#allocation2 + $0x118] sm:$0xff]
      %v2066 = vld [vmem:[#allocation2 + $0x120] sm:$0xff]
      %v2067 = vld [vmem:[#allocation2 + $0x128] sm:$0xff]
      %v2068 = vld [vmem:[#allocation2 + $0x130] sm:$0xff]
      %v2069 = vld [vmem:[#allocation2 + $0x138] sm:$0xff]
      %v2070 = vld [vmem:[#allocation2 + $0x140] sm:$0xff]
      %v2071 = vld [vmem:[#allocation2 + $0x148] sm:$0xff]
      %v2072 = vld [vmem:[#allocation2 + $0x150] sm:$0xff]
      %v2073 = vld [vmem:[#allocation2 + $0x158] sm:$0xff]
      %v2074 = vld [vmem:[#allocation2 + $0x160] sm:$0xff]
      %v2075 = vld [vmem:[#allocation2 + $0x168] sm:$0xff]
      %v2076 = vld [vmem:[#allocation2 + $0x170] sm:$0xff]
      %v2077 = vld [vmem:[#allocation2 + $0x178] sm:$0xff]
      %v2078 = vld [vmem:[#allocation2 + $0x180] sm:$0xff]
      %v2079 = vld [vmem:[#allocation2 + $0x188] sm:$0xff]
      %v2080 = vld [vmem:[#allocation2 + $0x190] sm:$0xff]
      %v2081 = vld [vmem:[#allocation2 + $0x198] sm:$0xff]
      %v2082 = vld [vmem:[#allocation2 + $0x1a0] sm:$0xff]
      %v2083 = vld [vmem:[#allocation2 + $0x1a8] sm:$0xff]
      %v2084 = vld [vmem:[#allocation2 + $0x1b0] sm:$0xff]
      %v2085 = vld [vmem:[#allocation2 + $0x1b8] sm:$0xff]
      %v2086 = vld [vmem:[#allocation2 + $0x1c0] sm:$0xff]
      %v2087 = vld [vmem:[#allocation2 + $0x1c8] sm:$0xff]
      %v2088 = vld [vmem:[#allocation2 + $0x1d0] sm:$0xff]
      %v2089 = vld [vmem:[#allocation2 + $0x1d8] sm:$0xff]
      %v2090 = vld [vmem:[#allocation2 + $0x1e0] sm:$0xff]
      %v2091 = vld [vmem:[#allocation2 + $0x1e8] sm:$0xff]
      %v2092 = vld [vmem:[#allocation2 + $0x1f0] sm:$0xff]
      %v2093 = vld [vmem:[#allocation2 + $0x1f8] sm:$0xff]
      %v2094 = vld [vmem:[#allocation2 + $0x200] sm:$0xff]
      %v2095 = vld [vmem:[#allocation2 + $0x208] sm:$0xff]
      %v2096 = vld [vmem:[#allocation2 + $0x210] sm:$0xff]
      %v2097 = vld [vmem:[#allocation2 + $0x218] sm:$0xff]
      %v2098 = vld [vmem:[#allocation2 + $0x220] sm:$0xff]
      %v2099 = vld [vmem:[#allocation2 + $0x228] sm:$0xff]
      %v2100 = vld [vmem:[#allocation2 + $0x230] sm:$0xff]
      %v2101 = vld [vmem:[#allocation2 + $0x238] sm:$0xff]
      %v2102 = vld [vmem:[#allocation2 + $0x240] sm:$0xff]
      %v2103 = vld [vmem:[#allocation2 + $0x248] sm:$0xff]
      %v2104 = vld [vmem:[#allocation2 + $0x250] sm:$0xff]
      %v2105 = vld [vmem:[#allocation2 + $0x258] sm:$0xff]
      %v2106 = vld [vmem:[#allocation2 + $0x260] sm:$0xff]
      %v2107 = vld [vmem:[#allocation2 + $0x268] sm:$0xff]
      %v2108 = vld [vmem:[#allocation2 + $0x270] sm:$0xff]
      %v2109 = vld [vmem:[#allocation2 + $0x278] sm:$0xff]
      %v2110 = vld [vmem:[#allocation2 + $0x280] sm:$0xff]
      %v2111 = vld [vmem:[#allocation2 + $0x288] sm:$0xff]
      %v2112 = vld [vmem:[#allocation2 + $0x290] sm:$0xff]
      %v2113 = vld [vmem:[#allocation2 + $0x298] sm:$0xff]
      %v2114 = vld [vmem:[#allocation2 + $0x2a0] sm:$0xff]
      %v2115 = vld [vmem:[#allocation2 + $0x2a8] sm:$0xff]
      %v2116 = vld [vmem:[#allocation2 + $0x2b0] sm:$0xff]
      %v2117 = vld [vmem:[#allocation2 + $0x2b8] sm:$0xff]
      %v2118 = vld [vmem:[#allocation2 + $0x2c0] sm:$0xff]
      %v2119 = vld [vmem:[#allocation2 + $0x2c8] sm:$0xff]
      %v2120 = vld [vmem:[#allocation2 + $0x2d0] sm:$0xff]
      %v2121 = vld [vmem:[#allocation2 + $0x2d8] sm:$0xff]
      %v2122 = vld [vmem:[#allocation2 + $0x2e0] sm:$0xff]
      %v2123 = vld [vmem:[#allocation2 + $0x2e8] sm:$0xff]
      %v2124 = vld [vmem:[#allocation2 + $0x2f0] sm:$0xff]
      %v2125 = vld [vmem:[#allocation2 + $0x2f8] sm:$0xff]
      %v2126 = vld [vmem:[#allocation2 + $0x300] sm:$0xff]
      %v2127 = vld [vmem:[#allocation2 + $0x308] sm:$0xff]
      %v2128 = vld [vmem:[#allocation2 + $0x310] sm:$0xff]
      %v2129 = vld [vmem:[#allocation2 + $0x318] sm:$0xff]
      %v2130 = vld [vmem:[#allocation2 + $0x320] sm:$0xff]
      %v2131 = vld [vmem:[#allocation2 + $0x328] sm:$0xff]
      %v2132 = vld [vmem:[#allocation2 + $0x330] sm:$0xff]
      %v2133 = vld [vmem:[#allocation2 + $0x338] sm:$0xff]
      %v2134 = vld [vmem:[#allocation2 + $0x340] sm:$0xff]
      %v2135 = vld [vmem:[#allocation2 + $0x348] sm:$0xff]
      %v2136 = vld [vmem:[#allocation2 + $0x350] sm:$0xff]
      %v2137 = vld [vmem:[#allocation2 + $0x358] sm:$0xff]
      %v2138 = vld [vmem:[#allocation2 + $0x360] sm:$0xff]
      %v2139 = vld [vmem:[#allocation2 + $0x368] sm:$0xff]
      %v2140 = vld [vmem:[#allocation2 + $0x370] sm:$0xff]
      %v2141 = vld [vmem:[#allocation2 + $0x378] sm:$0xff]
      %v2142 = vld [vmem:[#allocation2 + $0x380] sm:$0xff]
      %v2143 = vld [vmem:[#allocation2 + $0x388] sm:$0xff]
      %v2144 = vld [vmem:[#allocation2 + $0x390] sm:$0xff]
      %v2145 = vld [vmem:[#allocation2 + $0x398] sm:$0xff]
      %v2146 = vld [vmem:[#allocation2 + $0x3a0] sm:$0xff]
      %v2147 = vld [vmem:[#allocation2 + $0x3a8] sm:$0xff]
      %v2148 = vld [vmem:[#allocation2 + $0x3b0] sm:$0xff]
      %v2149 = vld [vmem:[#allocation2 + $0x3b8] sm:$0xff]
      %v2150 = vld [vmem:[#allocation2 + $0x3c0] sm:$0xff]
      %v2151 = vld [vmem:[#allocation2 + $0x3c8] sm:$0xff]
      %v2152 = vld [vmem:[#allocation2 + $0x3d0] sm:$0xff]
      %v2153 = vld [vmem:[#allocation2 + $0x3d8] sm:$0xff]
      %v2154 = vld [vmem:[#allocation2 + $0x3e0] sm:$0xff]
      %v2155 = vld [vmem:[#allocation2 + $0x3e8] sm:$0xff]
      %v2156 = vld [vmem:[#allocation2 + $0x3f0] sm:$0xff]
      %v2157 = vld [vmem:[#allocation2 + $0x3f8] sm:$0xff]
      %v2158 = vmul.f32 %v2030, %v2030
      %v2159 = vmul.f32 %v2031, %v2031
      %v2160 = vmul.f32 %v2032, %v2032
      %v2161 = vmul.f32 %v2033, %v2033
      %v2162 = vmul.f32 %v2034, %v2034
      %v2163 = vmul.f32 %v2035, %v2035
      %v2164 = vmul.f32 %v2036, %v2036
      %v2165 = vmul.f32 %v2037, %v2037
      %v2166 = vmul.f32 %v2038, %v2038
      %v2167 = vmul.f32 %v2039, %v2039
      %v2168 = vmul.f32 %v2040, %v2040
      %v2169 = vmul.f32 %v2041, %v2041
      %v2170 = vmul.f32 %v2042, %v2042
      %v2171 = vmul.f32 %v2043, %v2043
      %v2172 = vmul.f32 %v2044, %v2044
      %v2173 = vmul.f32 %v2045, %v2045
      %v2174 = vmul.f32 %v2046, %v2046
      %v2175 = vmul.f32 %v2047, %v2047
      %v2176 = vmul.f32 %v2048, %v2048
      %v2177 = vmul.f32 %v2049, %v2049
      %v2178 = vmul.f32 %v2050, %v2050
      %v2179 = vmul.f32 %v2051, %v2051
      %v2180 = vmul.f32 %v2052, %v2052
      %v2181 = vmul.f32 %v2053, %v2053
      %v2182 = vmul.f32 %v2054, %v2054
      %v2183 = vmul.f32 %v2055, %v2055
      %v2184 = vmul.f32 %v2056, %v2056
      %v2185 = vmul.f32 %v2057, %v2057
      %v2186 = vmul.f32 %v2058, %v2058
      %v2187 = vmul.f32 %v2059, %v2059
      %v2188 = vmul.f32 %v2060, %v2060
      %v2189 = vmul.f32 %v2061, %v2061
      %v2190 = vmul.f32 %v2062, %v2062
      %v2191 = vmul.f32 %v2063, %v2063
      %v2192 = vmul.f32 %v2064, %v2064
      %v2193 = vmul.f32 %v2065, %v2065
      %v2194 = vmul.f32 %v2066, %v2066
      %v2195 = vmul.f32 %v2067, %v2067
      %v2196 = vmul.f32 %v2068, %v2068
      %v2197 = vmul.f32 %v2069, %v2069
      %v2198 = vmul.f32 %v2070, %v2070
      %v2199 = vmul.f32 %v2071, %v2071
      %v2200 = vmul.f32 %v2072, %v2072
      %v2201 = vmul.f32 %v2073, %v2073
      %v2202 = vmul.f32 %v2074, %v2074
      %v2203 = vmul.f32 %v2075, %v2075
      %v2204 = vmul.f32 %v2076, %v2076
      %v2205 = vmul.f32 %v2077, %v2077
      %v2206 = vmul.f32 %v2078, %v2078
      %v2207 = vmul.f32 %v2079, %v2079
      %v2208 = vmul.f32 %v2080, %v2080
      %v2209 = vmul.f32 %v2081, %v2081
      %v2210 = vmul.f32 %v2082, %v2082
      %v2211 = vmul.f32 %v2083, %v2083
      %v2212 = vmul.f32 %v2084, %v2084
      %v2213 = vmul.f32 %v2085, %v2085
      %v2214 = vmul.f32 %v2086, %v2086
      %v2215 = vmul.f32 %v2087, %v2087
      %v2216 = vmul.f32 %v2088, %v2088
      %v2217 = vmul.f32 %v2089, %v2089
      %v2218 = vmul.f32 %v2090, %v2090
      %v2219 = vmul.f32 %v2091, %v2091
      %v2220 = vmul.f32 %v2092, %v2092
      %v2221 = vmul.f32 %v2093, %v2093
      %v2222 = vmul.f32 %v2094, %v2094
      %v2223 = vmul.f32 %v2095, %v2095
      %v2224 = vmul.f32 %v2096, %v2096
      %v2225 = vmul.f32 %v2097, %v2097
      %v2226 = vmul.f32 %v2098, %v2098
      %v2227 = vmul.f32 %v2099, %v2099
      %v2228 = vmul.f32 %v2100, %v2100
      %v2229 = vmul.f32 %v2101, %v2101
      %v2230 = vmul.f32 %v2102, %v2102
      %v2231 = vmul.f32 %v2103, %v2103
      %v2232 = vmul.f32 %v2104, %v2104
      %v2233 = vmul.f32 %v2105, %v2105
      %v2234 = vmul.f32 %v2106, %v2106
      %v2235 = vmul.f32 %v2107, %v2107
      %v2236 = vmul.f32 %v2108, %v2108
      %v2237 = vmul.f32 %v2109, %v2109
      %v2238 = vmul.f32 %v2110, %v2110
      %v2239 = vmul.f32 %v2111, %v2111
      %v2240 = vmul.f32 %v2112, %v2112
      %v2241 = vmul.f32 %v2113, %v2113
      %v2242 = vmul.f32 %v2114, %v2114
      %v2243 = vmul.f32 %v2115, %v2115
      %v2244 = vmul.f32 %v2116, %v2116
      %v2245 = vmul.f32 %v2117, %v2117
      %v2246 = vmul.f32 %v2118, %v2118
      %v2247 = vmul.f32 %v2119, %v2119
      %v2248 = vmul.f32 %v2120, %v2120
      %v2249 = vmul.f32 %v2121, %v2121
      %v2250 = vmul.f32 %v2122, %v2122
      %v2251 = vmul.f32 %v2123, %v2123
      %v2252 = vmul.f32 %v2124, %v2124
      %v2253 = vmul.f32 %v2125, %v2125
      %v2254 = vmul.f32 %v2126, %v2126
      %v2255 = vmul.f32 %v2127, %v2127
      %v2256 = vmul.f32 %v2128, %v2128
      %v2257 = vmul.f32 %v2129, %v2129
      %v2258 = vmul.f32 %v2130, %v2130
      %v2259 = vmul.f32 %v2131, %v2131
      %v2260 = vmul.f32 %v2132, %v2132
      %v2261 = vmul.f32 %v2133, %v2133
      %v2262 = vmul.f32 %v2134, %v2134
      %v2263 = vmul.f32 %v2135, %v2135
      %v2264 = vmul.f32 %v2136, %v2136
      %v2265 = vmul.f32 %v2137, %v2137
      %v2266 = vmul.f32 %v2138, %v2138
      %v2267 = vmul.f32 %v2139, %v2139
      %v2268 = vmul.f32 %v2140, %v2140
      %v2269 = vmul.f32 %v2141, %v2141
      %v2270 = vmul.f32 %v2142, %v2142
      %v2271 = vmul.f32 %v2143, %v2143
      %v2272 = vmul.f32 %v2144, %v2144
      %v2273 = vmul.f32 %v2145, %v2145
      %v2274 = vmul.f32 %v2146, %v2146
      %v2275 = vmul.f32 %v2147, %v2147
      %v2276 = vmul.f32 %v2148, %v2148
      %v2277 = vmul.f32 %v2149, %v2149
      %v2278 = vmul.f32 %v2150, %v2150
      %v2279 = vmul.f32 %v2151, %v2151
      %v2280 = vmul.f32 %v2152, %v2152
      %v2281 = vmul.f32 %v2153, %v2153
      %v2282 = vmul.f32 %v2154, %v2154
      %v2283 = vmul.f32 %v2155, %v2155
      %v2284 = vmul.f32 %v2156, %v2156
      %v2285 = vmul.f32 %v2157, %v2157
      %v2286 = vsel %vm1898, %v2158, 0.0
      %2287 = vadd.xlane.f32.xlu0 %v2286
      %v2288 = vpop.xlane.xlu0 %2287
      %v2289 = vsel %vm1898, %v2159, 0.0
      %2290 = vadd.xlane.f32.xlu0 %v2289
      %v2291 = vpop.xlane.xlu0 %2290
      %v2292 = vsel %vm1898, %v2160, 0.0
      %2293 = vadd.xlane.f32.xlu0 %v2292
      %v2294 = vpop.xlane.xlu0 %2293
      %v2295 = vsel %vm1898, %v2161, 0.0
      %2296 = vadd.xlane.f32.xlu0 %v2295
      %v2297 = vpop.xlane.xlu0 %2296
      %v2298 = vsel %vm1898, %v2162, 0.0
      %2299 = vadd.xlane.f32.xlu0 %v2298
      %v2300 = vpop.xlane.xlu0 %2299
      %v2301 = vsel %vm1898, %v2163, 0.0
      %2302 = vadd.xlane.f32.xlu0 %v2301
      %v2303 = vpop.xlane.xlu0 %2302
      %v2304 = vsel %vm1898, %v2164, 0.0
      %2305 = vadd.xlane.f32.xlu0 %v2304
      %v2306 = vpop.xlane.xlu0 %2305
      %v2307 = vsel %vm1898, %v2165, 0.0
      %2308 = vadd.xlane.f32.xlu0 %v2307
      %v2309 = vpop.xlane.xlu0 %2308
      %v2310 = vsel %vm1898, %v2166, 0.0
      %2311 = vadd.xlane.f32.xlu0 %v2310
      %v2312 = vpop.xlane.xlu0 %2311
      %v2313 = vsel %vm1898, %v2167, 0.0
      %2314 = vadd.xlane.f32.xlu0 %v2313
      %v2315 = vpop.xlane.xlu0 %2314
      %v2316 = vsel %vm1898, %v2168, 0.0
      %2317 = vadd.xlane.f32.xlu0 %v2316
      %v2318 = vpop.xlane.xlu0 %2317
      %v2319 = vsel %vm1898, %v2169, 0.0
      %2320 = vadd.xlane.f32.xlu0 %v2319
      %v2321 = vpop.xlane.xlu0 %2320
      %v2322 = vsel %vm1898, %v2170, 0.0
      %2323 = vadd.xlane.f32.xlu0 %v2322
      %v2324 = vpop.xlane.xlu0 %2323
      %v2325 = vsel %vm1898, %v2171, 0.0
      %2326 = vadd.xlane.f32.xlu0 %v2325
      %v2327 = vpop.xlane.xlu0 %2326
      %v2328 = vsel %vm1898, %v2172, 0.0
      %2329 = vadd.xlane.f32.xlu0 %v2328
      %v2330 = vpop.xlane.xlu0 %2329
      %v2331 = vsel %vm1898, %v2173, 0.0
      %2332 = vadd.xlane.f32.xlu0 %v2331
      %v2333 = vpop.xlane.xlu0 %2332
      %v2334 = vsel %vm1898, %v2174, 0.0
      %2335 = vadd.xlane.f32.xlu0 %v2334
      %v2336 = vpop.xlane.xlu0 %2335
      %v2337 = vsel %vm1898, %v2175, 0.0
      %2338 = vadd.xlane.f32.xlu0 %v2337
      %v2339 = vpop.xlane.xlu0 %2338
      %v2340 = vsel %vm1898, %v2176, 0.0
      %2341 = vadd.xlane.f32.xlu0 %v2340
      %v2342 = vpop.xlane.xlu0 %2341
      %v2343 = vsel %vm1898, %v2177, 0.0
      %2344 = vadd.xlane.f32.xlu0 %v2343
      %v2345 = vpop.xlane.xlu0 %2344
      %v2346 = vsel %vm1898, %v2178, 0.0
      %2347 = vadd.xlane.f32.xlu0 %v2346
      %v2348 = vpop.xlane.xlu0 %2347
      %v2349 = vsel %vm1898, %v2179, 0.0
      %2350 = vadd.xlane.f32.xlu0 %v2349
      %v2351 = vpop.xlane.xlu0 %2350
      %v2352 = vsel %vm1898, %v2180, 0.0
      %2353 = vadd.xlane.f32.xlu0 %v2352
      %v2354 = vpop.xlane.xlu0 %2353
      %v2355 = vsel %vm1898, %v2181, 0.0
      %2356 = vadd.xlane.f32.xlu0 %v2355
      %v2357 = vpop.xlane.xlu0 %2356
      %v2358 = vsel %vm1898, %v2182, 0.0
      %2359 = vadd.xlane.f32.xlu0 %v2358
      %v2360 = vpop.xlane.xlu0 %2359
      %v2361 = vsel %vm1898, %v2183, 0.0
      %2362 = vadd.xlane.f32.xlu0 %v2361
      %v2363 = vpop.xlane.xlu0 %2362
      %v2364 = vsel %vm1898, %v2184, 0.0
      %2365 = vadd.xlane.f32.xlu0 %v2364
      %v2366 = vpop.xlane.xlu0 %2365
      %v2367 = vsel %vm1898, %v2185, 0.0
      %2368 = vadd.xlane.f32.xlu0 %v2367
      %v2369 = vpop.xlane.xlu0 %2368
      %v2370 = vsel %vm1898, %v2186, 0.0
      %2371 = vadd.xlane.f32.xlu0 %v2370
      %v2372 = vpop.xlane.xlu0 %2371
      %v2373 = vsel %vm1898, %v2187, 0.0
      %2374 = vadd.xlane.f32.xlu0 %v2373
      %v2375 = vpop.xlane.xlu0 %2374
      %v2376 = vsel %vm1898, %v2188, 0.0
      %2377 = vadd.xlane.f32.xlu0 %v2376
      %v2378 = vpop.xlane.xlu0 %2377
      %v2379 = vsel %vm1898, %v2189, 0.0
      %2380 = vadd.xlane.f32.xlu0 %v2379
      %v2381 = vpop.xlane.xlu0 %2380
      %v2382 = vsel %vm1898, %v2190, 0.0
      %2383 = vadd.xlane.f32.xlu0 %v2382
      %v2384 = vpop.xlane.xlu0 %2383
      %v2385 = vsel %vm1898, %v2191, 0.0
      %2386 = vadd.xlane.f32.xlu0 %v2385
      %v2387 = vpop.xlane.xlu0 %2386
      %v2388 = vsel %vm1898, %v2192, 0.0
      %2389 = vadd.xlane.f32.xlu0 %v2388
      %v2390 = vpop.xlane.xlu0 %2389
      %v2391 = vsel %vm1898, %v2193, 0.0
      %2392 = vadd.xlane.f32.xlu0 %v2391
      %v2393 = vpop.xlane.xlu0 %2392
      %v2394 = vsel %vm1898, %v2194, 0.0
      %2395 = vadd.xlane.f32.xlu0 %v2394
      %v2396 = vpop.xlane.xlu0 %2395
      %v2397 = vsel %vm1898, %v2195, 0.0
      %2398 = vadd.xlane.f32.xlu0 %v2397
      %v2399 = vpop.xlane.xlu0 %2398
      %v2400 = vsel %vm1898, %v2196, 0.0
      %2401 = vadd.xlane.f32.xlu0 %v2400
      %v2402 = vpop.xlane.xlu0 %2401
      %v2403 = vsel %vm1898, %v2197, 0.0
      %2404 = vadd.xlane.f32.xlu0 %v2403
      %v2405 = vpop.xlane.xlu0 %2404
      %v2406 = vsel %vm1898, %v2198, 0.0
      %2407 = vadd.xlane.f32.xlu0 %v2406
      %v2408 = vpop.xlane.xlu0 %2407
      %v2409 = vsel %vm1898, %v2199, 0.0
      %2410 = vadd.xlane.f32.xlu0 %v2409
      %v2411 = vpop.xlane.xlu0 %2410
      %v2412 = vsel %vm1898, %v2200, 0.0
      %2413 = vadd.xlane.f32.xlu0 %v2412
      %v2414 = vpop.xlane.xlu0 %2413
      %v2415 = vsel %vm1898, %v2201, 0.0
      %2416 = vadd.xlane.f32.xlu0 %v2415
      %v2417 = vpop.xlane.xlu0 %2416
      %v2418 = vsel %vm1898, %v2202, 0.0
      %2419 = vadd.xlane.f32.xlu0 %v2418
      %v2420 = vpop.xlane.xlu0 %2419
      %v2421 = vsel %vm1898, %v2203, 0.0
      %2422 = vadd.xlane.f32.xlu0 %v2421
      %v2423 = vpop.xlane.xlu0 %2422
      %v2424 = vsel %vm1898, %v2204, 0.0
      %2425 = vadd.xlane.f32.xlu0 %v2424
      %v2426 = vpop.xlane.xlu0 %2425
      %v2427 = vsel %vm1898, %v2205, 0.0
      %2428 = vadd.xlane.f32.xlu0 %v2427
      %v2429 = vpop.xlane.xlu0 %2428
      %v2430 = vsel %vm1898, %v2206, 0.0
      %2431 = vadd.xlane.f32.xlu0 %v2430
      %v2432 = vpop.xlane.xlu0 %2431
      %v2433 = vsel %vm1898, %v2207, 0.0
      %2434 = vadd.xlane.f32.xlu0 %v2433
      %v2435 = vpop.xlane.xlu0 %2434
      %v2436 = vsel %vm1898, %v2208, 0.0
      %2437 = vadd.xlane.f32.xlu0 %v2436
      %v2438 = vpop.xlane.xlu0 %2437
      %v2439 = vsel %vm1898, %v2209, 0.0
      %2440 = vadd.xlane.f32.xlu0 %v2439
      %v2441 = vpop.xlane.xlu0 %2440
      %v2442 = vsel %vm1898, %v2210, 0.0
      %2443 = vadd.xlane.f32.xlu0 %v2442
      %v2444 = vpop.xlane.xlu0 %2443
      %v2445 = vsel %vm1898, %v2211, 0.0
      %2446 = vadd.xlane.f32.xlu0 %v2445
      %v2447 = vpop.xlane.xlu0 %2446
      %v2448 = vsel %vm1898, %v2212, 0.0
      %2449 = vadd.xlane.f32.xlu0 %v2448
      %v2450 = vpop.xlane.xlu0 %2449
      %v2451 = vsel %vm1898, %v2213, 0.0
      %2452 = vadd.xlane.f32.xlu0 %v2451
      %v2453 = vpop.xlane.xlu0 %2452
      %v2454 = vsel %vm1898, %v2214, 0.0
      %2455 = vadd.xlane.f32.xlu0 %v2454
      %v2456 = vpop.xlane.xlu0 %2455
      %v2457 = vsel %vm1898, %v2215, 0.0
      %2458 = vadd.xlane.f32.xlu0 %v2457
      %v2459 = vpop.xlane.xlu0 %2458
      %v2460 = vsel %vm1898, %v2216, 0.0
      %2461 = vadd.xlane.f32.xlu0 %v2460
      %v2462 = vpop.xlane.xlu0 %2461
      %v2463 = vsel %vm1898, %v2217, 0.0
      %2464 = vadd.xlane.f32.xlu0 %v2463
      %v2465 = vpop.xlane.xlu0 %2464
      %v2466 = vsel %vm1898, %v2218, 0.0
      %2467 = vadd.xlane.f32.xlu0 %v2466
      %v2468 = vpop.xlane.xlu0 %2467
      %v2469 = vsel %vm1898, %v2219, 0.0
      %2470 = vadd.xlane.f32.xlu0 %v2469
      %v2471 = vpop.xlane.xlu0 %2470
      %v2472 = vsel %vm1898, %v2220, 0.0
      %2473 = vadd.xlane.f32.xlu0 %v2472
      %v2474 = vpop.xlane.xlu0 %2473
      %v2475 = vsel %vm1898, %v2221, 0.0
      %2476 = vadd.xlane.f32.xlu0 %v2475
      %v2477 = vpop.xlane.xlu0 %2476
      %v2478 = vsel %vm1898, %v2222, 0.0
      %2479 = vadd.xlane.f32.xlu0 %v2478
      %v2480 = vpop.xlane.xlu0 %2479
      %v2481 = vsel %vm1898, %v2223, 0.0
      %2482 = vadd.xlane.f32.xlu0 %v2481
      %v2483 = vpop.xlane.xlu0 %2482
      %v2484 = vsel %vm1898, %v2224, 0.0
      %2485 = vadd.xlane.f32.xlu0 %v2484
      %v2486 = vpop.xlane.xlu0 %2485
      %v2487 = vsel %vm1898, %v2225, 0.0
      %2488 = vadd.xlane.f32.xlu0 %v2487
      %v2489 = vpop.xlane.xlu0 %2488
      %v2490 = vsel %vm1898, %v2226, 0.0
      %2491 = vadd.xlane.f32.xlu0 %v2490
      %v2492 = vpop.xlane.xlu0 %2491
      %v2493 = vsel %vm1898, %v2227, 0.0
      %2494 = vadd.xlane.f32.xlu0 %v2493
      %v2495 = vpop.xlane.xlu0 %2494
      %v2496 = vsel %vm1898, %v2228, 0.0
      %2497 = vadd.xlane.f32.xlu0 %v2496
      %v2498 = vpop.xlane.xlu0 %2497
      %v2499 = vsel %vm1898, %v2229, 0.0
      %2500 = vadd.xlane.f32.xlu0 %v2499
      %v2501 = vpop.xlane.xlu0 %2500
      %v2502 = vsel %vm1898, %v2230, 0.0
      %2503 = vadd.xlane.f32.xlu0 %v2502
      %v2504 = vpop.xlane.xlu0 %2503
      %v2505 = vsel %vm1898, %v2231, 0.0
      %2506 = vadd.xlane.f32.xlu0 %v2505
      %v2507 = vpop.xlane.xlu0 %2506
      %v2508 = vsel %vm1898, %v2232, 0.0
      %2509 = vadd.xlane.f32.xlu0 %v2508
      %v2510 = vpop.xlane.xlu0 %2509
      %v2511 = vsel %vm1898, %v2233, 0.0
      %2512 = vadd.xlane.f32.xlu0 %v2511
      %v2513 = vpop.xlane.xlu0 %2512
      %v2514 = vsel %vm1898, %v2234, 0.0
      %2515 = vadd.xlane.f32.xlu0 %v2514
      %v2516 = vpop.xlane.xlu0 %2515
      %v2517 = vsel %vm1898, %v2235, 0.0
      %2518 = vadd.xlane.f32.xlu0 %v2517
      %v2519 = vpop.xlane.xlu0 %2518
      %v2520 = vsel %vm1898, %v2236, 0.0
      %2521 = vadd.xlane.f32.xlu0 %v2520
      %v2522 = vpop.xlane.xlu0 %2521
      %v2523 = vsel %vm1898, %v2237, 0.0
      %2524 = vadd.xlane.f32.xlu0 %v2523
      %v2525 = vpop.xlane.xlu0 %2524
      %v2526 = vsel %vm1898, %v2238, 0.0
      %2527 = vadd.xlane.f32.xlu0 %v2526
      %v2528 = vpop.xlane.xlu0 %2527
      %v2529 = vsel %vm1898, %v2239, 0.0
      %2530 = vadd.xlane.f32.xlu0 %v2529
      %v2531 = vpop.xlane.xlu0 %2530
      %v2532 = vsel %vm1898, %v2240, 0.0
      %2533 = vadd.xlane.f32.xlu0 %v2532
      %v2534 = vpop.xlane.xlu0 %2533
      %v2535 = vsel %vm1898, %v2241, 0.0
      %2536 = vadd.xlane.f32.xlu0 %v2535
      %v2537 = vpop.xlane.xlu0 %2536
      %v2538 = vsel %vm1898, %v2242, 0.0
      %2539 = vadd.xlane.f32.xlu0 %v2538
      %v2540 = vpop.xlane.xlu0 %2539
      %v2541 = vsel %vm1898, %v2243, 0.0
      %2542 = vadd.xlane.f32.xlu0 %v2541
      %v2543 = vpop.xlane.xlu0 %2542
      %v2544 = vsel %vm1898, %v2244, 0.0
      %2545 = vadd.xlane.f32.xlu0 %v2544
      %v2546 = vpop.xlane.xlu0 %2545
      %v2547 = vsel %vm1898, %v2245, 0.0
      %2548 = vadd.xlane.f32.xlu0 %v2547
      %v2549 = vpop.xlane.xlu0 %2548
      %v2550 = vsel %vm1898, %v2246, 0.0
      %2551 = vadd.xlane.f32.xlu0 %v2550
      %v2552 = vpop.xlane.xlu0 %2551
      %v2553 = vsel %vm1898, %v2247, 0.0
      %2554 = vadd.xlane.f32.xlu0 %v2553
      %v2555 = vpop.xlane.xlu0 %2554
      %v2556 = vsel %vm1898, %v2248, 0.0
      %2557 = vadd.xlane.f32.xlu0 %v2556
      %v2558 = vpop.xlane.xlu0 %2557
      %v2559 = vsel %vm1898, %v2249, 0.0
      %2560 = vadd.xlane.f32.xlu0 %v2559
      %v2561 = vpop.xlane.xlu0 %2560
      %v2562 = vsel %vm1898, %v2250, 0.0
      %2563 = vadd.xlane.f32.xlu0 %v2562
      %v2564 = vpop.xlane.xlu0 %2563
      %v2565 = vsel %vm1898, %v2251, 0.0
      %2566 = vadd.xlane.f32.xlu0 %v2565
      %v2567 = vpop.xlane.xlu0 %2566
      %v2568 = vsel %vm1898, %v2252, 0.0
      %2569 = vadd.xlane.f32.xlu0 %v2568
      %v2570 = vpop.xlane.xlu0 %2569
      %v2571 = vsel %vm1898, %v2253, 0.0
      %2572 = vadd.xlane.f32.xlu0 %v2571
      %v2573 = vpop.xlane.xlu0 %2572
      %v2574 = vsel %vm1898, %v2254, 0.0
      %2575 = vadd.xlane.f32.xlu0 %v2574
      %v2576 = vpop.xlane.xlu0 %2575
      %v2577 = vsel %vm1898, %v2255, 0.0
      %2578 = vadd.xlane.f32.xlu0 %v2577
      %v2579 = vpop.xlane.xlu0 %2578
      %v2580 = vsel %vm1898, %v2256, 0.0
      %2581 = vadd.xlane.f32.xlu0 %v2580
      %v2582 = vpop.xlane.xlu0 %2581
      %v2583 = vsel %vm1898, %v2257, 0.0
      %2584 = vadd.xlane.f32.xlu0 %v2583
      %v2585 = vpop.xlane.xlu0 %2584
      %v2586 = vsel %vm1898, %v2258, 0.0
      %2587 = vadd.xlane.f32.xlu0 %v2586
      %v2588 = vpop.xlane.xlu0 %2587
      %v2589 = vsel %vm1898, %v2259, 0.0
      %2590 = vadd.xlane.f32.xlu0 %v2589
      %v2591 = vpop.xlane.xlu0 %2590
      %v2592 = vsel %vm1898, %v2260, 0.0
      %2593 = vadd.xlane.f32.xlu0 %v2592
      %v2594 = vpop.xlane.xlu0 %2593
      %v2595 = vsel %vm1898, %v2261, 0.0
      %2596 = vadd.xlane.f32.xlu0 %v2595
      %v2597 = vpop.xlane.xlu0 %2596
      %v2598 = vsel %vm1898, %v2262, 0.0
      %2599 = vadd.xlane.f32.xlu0 %v2598
      %v2600 = vpop.xlane.xlu0 %2599
      %v2601 = vsel %vm1898, %v2263, 0.0
      %2602 = vadd.xlane.f32.xlu0 %v2601
      %v2603 = vpop.xlane.xlu0 %2602
      %v2604 = vsel %vm1898, %v2264, 0.0
      %2605 = vadd.xlane.f32.xlu0 %v2604
      %v2606 = vpop.xlane.xlu0 %2605
      %v2607 = vsel %vm1898, %v2265, 0.0
      %2608 = vadd.xlane.f32.xlu0 %v2607
      %v2609 = vpop.xlane.xlu0 %2608
      %v2610 = vsel %vm1898, %v2266, 0.0
      %2611 = vadd.xlane.f32.xlu0 %v2610
      %v2612 = vpop.xlane.xlu0 %2611
      %v2613 = vsel %vm1898, %v2267, 0.0
      %2614 = vadd.xlane.f32.xlu0 %v2613
      %v2615 = vpop.xlane.xlu0 %2614
      %v2616 = vsel %vm1898, %v2268, 0.0
      %2617 = vadd.xlane.f32.xlu0 %v2616
      %v2618 = vpop.xlane.xlu0 %2617
      %v2619 = vsel %vm1898, %v2269, 0.0
      %2620 = vadd.xlane.f32.xlu0 %v2619
      %v2621 = vpop.xlane.xlu0 %2620
      %v2622 = vsel %vm1898, %v2270, 0.0
      %2623 = vadd.xlane.f32.xlu0 %v2622
      %v2624 = vpop.xlane.xlu0 %2623
      %v2625 = vsel %vm1898, %v2271, 0.0
      %2626 = vadd.xlane.f32.xlu0 %v2625
      %v2627 = vpop.xlane.xlu0 %2626
      %v2628 = vsel %vm1898, %v2272, 0.0
      %2629 = vadd.xlane.f32.xlu0 %v2628
      %v2630 = vpop.xlane.xlu0 %2629
      %v2631 = vsel %vm1898, %v2273, 0.0
      %2632 = vadd.xlane.f32.xlu0 %v2631
      %v2633 = vpop.xlane.xlu0 %2632
      %v2634 = vsel %vm1898, %v2274, 0.0
      %2635 = vadd.xlane.f32.xlu0 %v2634
      %v2636 = vpop.xlane.xlu0 %2635
      %v2637 = vsel %vm1898, %v2275, 0.0
      %2638 = vadd.xlane.f32.xlu0 %v2637
      %v2639 = vpop.xlane.xlu0 %2638
      %v2640 = vsel %vm1898, %v2276, 0.0
      %2641 = vadd.xlane.f32.xlu0 %v2640
      %v2642 = vpop.xlane.xlu0 %2641
      %v2643 = vsel %vm1898, %v2277, 0.0
      %2644 = vadd.xlane.f32.xlu0 %v2643
      %v2645 = vpop.xlane.xlu0 %2644
      %v2646 = vsel %vm1898, %v2278, 0.0
      %2647 = vadd.xlane.f32.xlu0 %v2646
      %v2648 = vpop.xlane.xlu0 %2647
      %v2649 = vsel %vm1898, %v2279, 0.0
      %2650 = vadd.xlane.f32.xlu0 %v2649
      %v2651 = vpop.xlane.xlu0 %2650
      %v2652 = vsel %vm1898, %v2280, 0.0
      %2653 = vadd.xlane.f32.xlu0 %v2652
      %v2654 = vpop.xlane.xlu0 %2653
      %v2655 = vsel %vm1898, %v2281, 0.0
      %2656 = vadd.xlane.f32.xlu0 %v2655
      %v2657 = vpop.xlane.xlu0 %2656
      %v2658 = vsel %vm1898, %v2282, 0.0
      %2659 = vadd.xlane.f32.xlu0 %v2658
      %v2660 = vpop.xlane.xlu0 %2659
      %v2661 = vsel %vm1898, %v2283, 0.0
      %2662 = vadd.xlane.f32.xlu0 %v2661
      %v2663 = vpop.xlane.xlu0 %2662
      %v2664 = vsel %vm1898, %v2284, 0.0
      %2665 = vadd.xlane.f32.xlu0 %v2664
      %v2666 = vpop.xlane.xlu0 %2665
      %v2667 = vsel %vm1898, %v2285, 0.0
      %2668 = vadd.xlane.f32.xlu0 %v2667
      %v2669 = vpop.xlane.xlu0 %2668
      %v2670 = vadd.f32 %v2288, %v2291
      %v2671 = vadd.f32 %v2670, %v2294
      %v2672 = vadd.f32 %v2671, %v2297
      %v2673 = vadd.f32 %v2672, %v2300
      %v2674 = vadd.f32 %v2673, %v2303
      %v2675 = vadd.f32 %v2674, %v2306
      %v2676 = vadd.f32 %v2675, %v2309
      %v2677 = vadd.f32 %v2676, %v2312
      %v2678 = vadd.f32 %v2677, %v2315
      %v2679 = vadd.f32 %v2678, %v2318
      %v2680 = vadd.f32 %v2679, %v2321
      %v2681 = vadd.f32 %v2680, %v2324
      %v2682 = vadd.f32 %v2681, %v2327
      %v2683 = vadd.f32 %v2682, %v2330
      %v2684 = vadd.f32 %v2683, %v2333
      %v2685 = vadd.f32 %v2684, %v2336
      %v2686 = vadd.f32 %v2685, %v2339
      %v2687 = vadd.f32 %v2686, %v2342
      %v2688 = vadd.f32 %v2687, %v2345
      %v2689 = vadd.f32 %v2688, %v2348
      %v2690 = vadd.f32 %v2689, %v2351
      %v2691 = vadd.f32 %v2690, %v2354
      %v2692 = vadd.f32 %v2691, %v2357
      %v2693 = vadd.f32 %v2692, %v2360
      %v2694 = vadd.f32 %v2693, %v2363
      %v2695 = vadd.f32 %v2694, %v2366
      %v2696 = vadd.f32 %v2695, %v2369
      %v2697 = vadd.f32 %v2696, %v2372
      %v2698 = vadd.f32 %v2697, %v2375
      %v2699 = vadd.f32 %v2698, %v2378
      %v2700 = vadd.f32 %v2699, %v2381
      %v2701 = vadd.f32 %v2700, %v2384
      %v2702 = vadd.f32 %v2701, %v2387
      %v2703 = vadd.f32 %v2702, %v2390
      %v2704 = vadd.f32 %v2703, %v2393
      %v2705 = vadd.f32 %v2704, %v2396
      %v2706 = vadd.f32 %v2705, %v2399
      %v2707 = vadd.f32 %v2706, %v2402
      %v2708 = vadd.f32 %v2707, %v2405
      %v2709 = vadd.f32 %v2708, %v2408
      %v2710 = vadd.f32 %v2709, %v2411
      %v2711 = vadd.f32 %v2710, %v2414
      %v2712 = vadd.f32 %v2711, %v2417
      %v2713 = vadd.f32 %v2712, %v2420
      %v2714 = vadd.f32 %v2713, %v2423
      %v2715 = vadd.f32 %v2714, %v2426
      %v2716 = vadd.f32 %v2715, %v2429
      %v2717 = vadd.f32 %v2716, %v2432
      %v2718 = vadd.f32 %v2717, %v2435
      %v2719 = vadd.f32 %v2718, %v2438
      %v2720 = vadd.f32 %v2719, %v2441
      %v2721 = vadd.f32 %v2720, %v2444
      %v2722 = vadd.f32 %v2721, %v2447
      %v2723 = vadd.f32 %v2722, %v2450
      %v2724 = vadd.f32 %v2723, %v2453
      %v2725 = vadd.f32 %v2724, %v2456
      %v2726 = vadd.f32 %v2725, %v2459
      %v2727 = vadd.f32 %v2726, %v2462
      %v2728 = vadd.f32 %v2727, %v2465
      %v2729 = vadd.f32 %v2728, %v2468
      %v2730 = vadd.f32 %v2729, %v2471
      %v2731 = vadd.f32 %v2730, %v2474
      %v2732 = vadd.f32 %v2731, %v2477
      %v2733 = vadd.f32 %v2732, %v2480
      %v2734 = vadd.f32 %v2733, %v2483
      %v2735 = vadd.f32 %v2734, %v2486
      %v2736 = vadd.f32 %v2735, %v2489
      %v2737 = vadd.f32 %v2736, %v2492
      %v2738 = vadd.f32 %v2737, %v2495
      %v2739 = vadd.f32 %v2738, %v2498
      %v2740 = vadd.f32 %v2739, %v2501
      %v2741 = vadd.f32 %v2740, %v2504
      %v2742 = vadd.f32 %v2741, %v2507
      %v2743 = vadd.f32 %v2742, %v2510
      %v2744 = vadd.f32 %v2743, %v2513
      %v2745 = vadd.f32 %v2744, %v2516
      %v2746 = vadd.f32 %v2745, %v2519
      %v2747 = vadd.f32 %v2746, %v2522
      %v2748 = vadd.f32 %v2747, %v2525
      %v2749 = vadd.f32 %v2748, %v2528
      %v2750 = vadd.f32 %v2749, %v2531
      %v2751 = vadd.f32 %v2750, %v2534
      %v2752 = vadd.f32 %v2751, %v2537
      %v2753 = vadd.f32 %v2752, %v2540
      %v2754 = vadd.f32 %v2753, %v2543
      %v2755 = vadd.f32 %v2754, %v2546
      %v2756 = vadd.f32 %v2755, %v2549
      %v2757 = vadd.f32 %v2756, %v2552
      %v2758 = vadd.f32 %v2757, %v2555
      %v2759 = vadd.f32 %v2758, %v2558
      %v2760 = vadd.f32 %v2759, %v2561
      %v2761 = vadd.f32 %v2760, %v2564
      %v2762 = vadd.f32 %v2761, %v2567
      %v2763 = vadd.f32 %v2762, %v2570
      %v2764 = vadd.f32 %v2763, %v2573
      %v2765 = vadd.f32 %v2764, %v2576
      %v2766 = vadd.f32 %v2765, %v2579
      %v2767 = vadd.f32 %v2766, %v2582
      %v2768 = vadd.f32 %v2767, %v2585
      %v2769 = vadd.f32 %v2768, %v2588
      %v2770 = vadd.f32 %v2769, %v2591
      %v2771 = vadd.f32 %v2770, %v2594
      %v2772 = vadd.f32 %v2771, %v2597
      %v2773 = vadd.f32 %v2772, %v2600
      %v2774 = vadd.f32 %v2773, %v2603
      %v2775 = vadd.f32 %v2774, %v2606
      %v2776 = vadd.f32 %v2775, %v2609
      %v2777 = vadd.f32 %v2776, %v2612
      %v2778 = vadd.f32 %v2777, %v2615
      %v2779 = vadd.f32 %v2778, %v2618
      %v2780 = vadd.f32 %v2779, %v2621
      %v2781 = vadd.f32 %v2780, %v2624
      %v2782 = vadd.f32 %v2781, %v2627
      %v2783 = vadd.f32 %v2782, %v2630
      %v2784 = vadd.f32 %v2783, %v2633
      %v2785 = vadd.f32 %v2784, %v2636
      %v2786 = vadd.f32 %v2785, %v2639
      %v2787 = vadd.f32 %v2786, %v2642
      %v2788 = vadd.f32 %v2787, %v2645
      %v2789 = vadd.f32 %v2788, %v2648
      %v2790 = vadd.f32 %v2789, %v2651
      %v2791 = vadd.f32 %v2790, %v2654
      %v2792 = vadd.f32 %v2791, %v2657
      %v2793 = vadd.f32 %v2792, %v2660
      %v2794 = vadd.f32 %v2793, %v2663
      %v2795 = vadd.f32 %v2794, %v2666
      %v2796 = vadd.f32 %v2795, %v2669
      %v2797 = vrot.slane %v2796, 4
      %v2798 = vadd.f32 %v2796, %v2797
      %v2799 = vrot.slane %v2798, 2
      %v2800 = vadd.f32 %v2798, %v2799
      %v2801 = vrot.slane %v2800, 1
      %v2802 = vadd.f32 %v2800, %v2801
      %v2803 = vmul.f32 %v2802, 1.5258789e-05
      %vm2804 = vcmask 0
      %2805 = vst.msk [vmem:[#allocation3] sm:$0x1] %vm2804, %v2803
    $region17: #{diff_loss.1} parent=1 // pred_fallthru
      _
    // Predicated region
    $region18: #{diff_loss.1} parent=1 // pred_check
      _
    $region19: #{diff_loss.1} parent=1 // pred_check_branch
      %2807 = sbr.rel (0) target = $region21
    $region20: #{diff_loss.1} parent=1 // pred_region
      %s2809 = ssub.s32 16, 16
      %2810 = vsyncadd [#allocation4], %s2809
      %s2812 = sshll.u32 [#allocation3], 4
      %s2813 = int_to_ptr.vmem [resolvable:$true] %s2812
      %2815 = dma.vmem_to_hbm [thread:$0]  %s2813, 16, %s2, [#allocation4]
    $region21: #{diff_loss.1} parent=1 // pred_fallthru
      _
    // Predicated region
    $region22: #{diff_loss.1} parent=1 // pred_check
      _
    $region23: #{diff_loss.1} parent=1 // pred_check_branch
      %2817 = sbr.rel (0) target = $region25
    $region24: #{diff_loss.1} parent=1 // pred_region
      %2818 = dma.done [#allocation4], 16
    $region25: #{diff_loss.1} parent=1 // pred_fallthru
      _
    %2819 = vsyncpa [#allocation4], 1

</llo_original>
